<compile_context>
chip_gen: v5e
topology: v5e:2x2
jax: 0.10.0
libtpu: 0.0.40
codegen_flags: <defaults>
</compile_context>

<pallas_src>
import functools

import jax
import jax.numpy as jnp
from jax import lax
from jax.experimental import pallas as pl
from jax.experimental.pallas import tpu as pltpu

EPS = 1e-5      # nn.BatchNorm2d default eps
LANE = 128      # pad Cout to a multiple of this -> lane-dense stores


def _round_up(x, m):
    return (x + m - 1) // m * m


# ----------------------------------------------------------------------------
# DoReFa-style quantizers (pure jnp: used both in glue and inside kernels).
# ----------------------------------------------------------------------------
def quantize_k(x, k):
    n = float(2 ** k - 1)
    return jnp.round(x * n) / n


def act_quantize(x, abit):
    if abit >= 32:
        return x
    return quantize_k(jnp.clip(x, 0.0, 1.0), abit)


def weight_quantize(w, wbit):
    if wbit >= 32:
        return w
    if wbit == 1:
        return jnp.sign(w) * jnp.mean(jnp.abs(w))
    t = jnp.tanh(w)
    t = t / (2.0 * jnp.max(jnp.abs(t))) + 0.5
    return 2.0 * quantize_k(t, wbit) - 1.0


# ----------------------------------------------------------------------------
# Pass 1: per-image conv (row-shifted MXU dots) + per-image BN batch stats.
#   grid = (N,), dimension_semantics = ("parallel",)  -> v7x megacore friendly.
#   outputs: y (N, M_img, Cp) bf16, sum/sumsq (N, 1, Cp) f32 partials.
# ----------------------------------------------------------------------------
def _make_conv_stats_kernel(taps, m_img, n_x):
    def kernel(*refs):
        x_refs = refs[:n_x]
        w_ref = refs[n_x]
        y_ref, sum_ref, sumsq_ref = refs[n_x + 1:]
        acc = None
        for t, (ai, off) in enumerate(taps):
            lhs = x_refs[ai][pl.ds(off, m_img), :]              # aligned row slice
            d = jnp.dot(lhs, w_ref[t], preferred_element_type=jnp.float32)
            acc = d if acc is None else acc + d
        y_ref[...] = acc.astype(y_ref.dtype)                    # bf16 intermediate
        # BN batch statistics from the exact f32 accumulator.
        sum_ref[...] = jnp.sum(acc, axis=0, keepdims=True)
        sumsq_ref[...] = jnp.sum(acc * acc, axis=0, keepdims=True)
    return kernel


def _conv_stats(x_arrays, w_taps, taps, m_img):
    n_x = len(x_arrays)
    N = x_arrays[0].shape[0]
    Cp = w_taps.shape[-1]
    kernel = _make_conv_stats_kernel(tuple(taps), m_img, n_x)
    in_specs = [pl.BlockSpec((None,) + a.shape[1:], lambda n: (n, 0, 0))
                for a in x_arrays]
    # Weight tile: constant index map -> stays resident in VMEM across images.
    in_specs.append(pl.BlockSpec(w_taps.shape, lambda n: (0, 0, 0)))
    out_shape = (jax.ShapeDtypeStruct((N, m_img, Cp), jnp.bfloat16),
                 jax.ShapeDtypeStruct((N, 1, Cp), jnp.float32),
                 jax.ShapeDtypeStruct((N, 1, Cp), jnp.float32))
    out_specs = (pl.BlockSpec((None, m_img, Cp), lambda n: (n, 0, 0)),
                 pl.BlockSpec((None, 1, Cp), lambda n: (n, 0, 0)),
                 pl.BlockSpec((None, 1, Cp), lambda n: (n, 0, 0)))
    return pl.pallas_call(
        kernel,
        out_shape=out_shape,
        grid=(N,),
        in_specs=in_specs,
        out_specs=out_specs,
        compiler_params=pltpu.CompilerParams(
            dimension_semantics=("parallel",)),     # per-image partials -> safe
    )(*x_arrays, w_taps)


# Glue: build the W-direction shifted-concat inputs + weight tap matrices.
def _conv3x3_pass1(x_bf, w_q, stride, Hout, Wout, Cp):
    N, H, W, Cin = x_bf.shape
    Cout = w_q.shape[0]
    x_pad = jnp.pad(x_bf, ((0, 0), (1, 1), (1, 1), (0, 0)))
    cols = [x_pad[:, :, dx:dx + stride * Wout:stride, :] for dx in range(3)]
    xw = jnp.concatenate(cols, axis=-1)                 # (N, H+2, Wout, 3*Cin)
    K = 3 * Cin
    Kp = _round_up(K, 8)
    if stride == 1:
        arrays = [xw.reshape(N, (H + 2) * Wout, K)]
        taps = ((0, 0), (0, Wout), (0, 2 * Wout))       # dy = 0, 1, 2
    else:  # stride == 2: even/odd row split keeps taps as aligned row slices
        arrays = [xw[:, 0::2].reshape(N, -1, K),
                  xw[:, 1::2].reshape(N, -1, K)]
        taps = ((0, 0), (1, 0), (0, Wout))               # dy = 0, 1, 2
    arrays = [jnp.pad(a, ((0, 0), (0, 0), (0, Kp - K))) for a in arrays]
    wm = jnp.transpose(w_q, (2, 3, 1, 0)).reshape(3, K, Cout).astype(jnp.bfloat16)
    wm = jnp.pad(wm, ((0, 0), (0, Kp - K), (0, Cp - Cout)))
    return _conv_stats(arrays, wm, taps, Hout * Wout)


def _conv1x1_pass1(x_bf, w_q, stride, Hout, Wout, Cp):
    N, H, W, Cin = x_bf.shape
    Cout = w_q.shape[0]
    xs = x_bf[:, ::stride, ::stride, :].reshape(N, Hout * Wout, Cin)
    Kp = _round_up(Cin, 8)
    xs = jnp.pad(xs, ((0, 0), (0, 0), (0, Kp - Cin)))
    wm = jnp.transpose(w_q.reshape(Cout, Cin), (1, 0)).reshape(1, Cin, Cout)
    wm = jnp.pad(wm.astype(jnp.bfloat16), ((0, 0), (0, Kp - Cin), (0, Cp - Cout)))
    return _conv_stats([xs], wm, ((0, 0),), Hout * Wout)


def _bn_affine(sum_p, sumsq_p, gamma, beta, m_total, Cp):
    s = jnp.sum(sum_p, axis=(0, 1))
    ss = jnp.sum(sumsq_p, axis=(0, 1))
    mean = s / m_total
    var = jnp.maximum(ss / m_total - mean * mean, 0.0)
    g = jnp.pad(gamma.astype(jnp.float32), (0, Cp - gamma.shape[0]))
    b = jnp.pad(beta.astype(jnp.float32), (0, Cp - beta.shape[0]))
    scale = g * lax.rsqrt(var + EPS)
    bias = b - mean * scale
    return scale, bias


# ----------------------------------------------------------------------------
# Pass 2: streaming BN apply + act quant (+ fused shortcut) (+ ReLU).
#   short_mode: None | "raw" (identity add) | "bnq" (BN+quant the shortcut's
#   raw conv output in-kernel -- no quantized-shortcut HBM intermediate).
# ----------------------------------------------------------------------------
def _make_apply_kernel(abit, relu, short_mode):
    def kernel(*refs):
        it = iter(refs)
        y_ref = next(it); sc_ref = next(it); b_ref = next(it)
        s_ref = ssc_ref = sb_ref = None
        if short_mode is not None:
            s_ref = next(it)
            if short_mode == "bnq":
                ssc_ref = next(it); sb_ref = next(it)
        o_ref = next(it)
        y = y_ref[...].astype(jnp.float32) * sc_ref[...] + b_ref[...]
        y = act_quantize(y, abit)
        if short_mode == "raw":
            y = y + s_ref[...].astype(jnp.float32)
        elif short_mode == "bnq":
            s = s_ref[...].astype(jnp.float32) * ssc_ref[...] + sb_ref[...]
            y = y + act_quantize(s, abit)
        if relu:
            y = jnp.maximum(y, 0.0)
        o_ref[...] = y.astype(o_ref.dtype)
    return kernel


def _bn_apply(y, scale, bias, short=None, short_scale=None, short_bias=None, *,
              abit, relu, short_mode, out_dtype):
    M, Cp = y.shape
    # Size row tiles by bytes (~1 MiB of bf16 per y block), not a fixed count.
    tm = max(512, ((1 << 20) // (Cp * 2)) // 8 * 8)
    tm = int(min(_round_up(M, 8), tm))
    Mp = _round_up(M, tm)

    def padded(a):
        return jnp.pad(a, ((0, Mp - M), (0, 0)))

    row_spec = pl.BlockSpec((tm, Cp), lambda i: (i, 0))
    vec_spec = pl.BlockSpec((1, Cp), lambda i: (0, 0))   # resident across tiles
    inputs = [padded(y), scale.reshape(1, Cp), bias.reshape(1, Cp)]
    in_specs = [row_spec, vec_spec, vec_spec]
    if short_mode is not None:
        inputs.append(padded(short)); in_specs.append(row_spec)
        if short_mode == "bnq":
            inputs += [short_scale.reshape(1, Cp), short_bias.reshape(1, Cp)]
            in_specs += [vec_spec, vec_spec]
    out = pl.pallas_call(
        _make_apply_kernel(abit, relu, short_mode),
        out_shape=jax.ShapeDtypeStruct((Mp, Cp), out_dtype),
        grid=(Mp // tm,),
        in_specs=in_specs,
        out_specs=row_spec,
        compiler_params=pltpu.CompilerParams(
            dimension_semantics=("parallel",)),
    )(*inputs)
    return out[:M]


# ----------------------------------------------------------------------------
# Full block forward.
# ----------------------------------------------------------------------------
@functools.partial(jax.jit, static_argnames=("stride", "wbit", "abit"))
def preact_block_forward(x_nchw, params, *, stride, wbit, abit):
    x = jnp.transpose(x_nchw, (0, 2, 3, 1)).astype(jnp.float32)    # NHWC
    N, H, W, Cin = x.shape
    Hout = (H + 2 - 3) // stride + 1
    Wout = (W + 2 - 3) // stride + 1
    M = N * Hout * Wout

    w0q = weight_quantize(params["w0"], wbit)        # (Cout, Cin, 3, 3)
    w1q = weight_quantize(params["w1"], wbit)        # (Cout, Cout, 3, 3)
    Cout = w0q.shape[0]
    Cp = _round_up(max(Cout, LANE), LANE)

    x_bf = x.astype(jnp.bfloat16)

    # --- conv0 pass 1 (+ BN0 batch statistics) -------------------------------
    y0, s0, q0 = _conv3x3_pass1(x_bf, w0q, stride, Hout, Wout, Cp)
    scale0, bias0 = _bn_affine(s0, q0, params["gamma0"], params["beta0"],
                               float(M), Cp)

    # --- shortcut branch ------------------------------------------------------
    if stride != 1:
        wsq = weight_quantize(params["ws"], wbit)    # (Cout, Cin, 1, 1)
        ys, ss, qs = _conv1x1_pass1(x_bf, wsq, stride, Hout, Wout, Cp)
        short = ys.reshape(M, Cp)                    # raw bf16 conv output
        scale_s, bias_s = _bn_affine(ss, qs, params["gamma_s"], params["beta_s"],
                                     float(M), Cp)
        short_mode = "bnq"                           # BN+quant fused into pass 2
    else:
        short = jnp.pad(x_bf.reshape(M, Cin), ((0, 0), (0, Cp - Cin)))
        scale_s = bias_s = None
        short_mode = "raw"                           # identity add

    # --- conv0 pass 2: BN apply + act quant + ReLU -> h (bf16) ----------------
    h = _bn_apply(y0.reshape(M, Cp), scale0, bias0,
                  abit=abit, relu=True, short_mode=None, out_dtype=jnp.bfloat16)
    h_nhwc = h[:, :Cout].reshape(N, Hout, Wout, Cout)

    # --- conv1 pass 1 (+ BN1 batch statistics) --------------------------------
    y1, s1, q1 = _conv3x3_pass1(h_nhwc, w1q, 1, Hout, Wout, Cp)
    scale1, bias1 = _bn_affine(s1, q1, params["gamma1"], params["beta1"],
                               float(M), Cp)

    # --- conv1 pass 2: BN+quant, fused shortcut, final ReLU -------------------
    out2d = _bn_apply(y1.reshape(M, Cp), scale1, bias1, short, scale_s, bias_s,
                      abit=abit, relu=True, short_mode=short_mode,
                      out_dtype=jnp.float32)
    out = out2d[:, :Cout].reshape(N, Hout, Wout, Cout)
    return jnp.transpose(out, (0, 3, 1, 2))          # back to NCHW


# ----------------------------------------------------------------------------
# Matched-precision pure-JAX reference (bf16 conv operands / bf16 intermediate
# storage like the kernel path, f32 accumulation + BN/quant).
# ----------------------------------------------------------------------------
def _conv_ref(x_nhwc, w_oihw, stride, pad):
    w_hwio = jnp.transpose(w_oihw, (2, 3, 1, 0)).astype(jnp.bfloat16)
    return lax.conv_general_dilated(
        x_nhwc.astype(jnp.bfloat16), w_hwio, (stride, stride),
        padding=((pad, pad), (pad, pad)),
        dimension_numbers=("NHWC", "HWIO", "NHWC"),
        preferred_element_type=jnp.float32)


def _bn_ref(y, gamma, beta):
    mean = jnp.mean(y, axis=(0, 1, 2), keepdims=True)
    var = jnp.maximum(jnp.mean(y * y, axis=(0, 1, 2), keepdims=True) - mean * mean, 0.0)
    return (y - mean) * (gamma * lax.rsqrt(var + EPS)) + beta


def preact_block_ref(x_nchw, params, *, stride, wbit, abit):
    x = jnp.transpose(x_nchw, (0, 2, 3, 1)).astype(jnp.float32)
    w0q = weight_quantize(params["w0"], wbit)
    w1q = weight_quantize(params["w1"], wbit)
    if stride != 1:
        wsq = weight_quantize(params["ws"], wbit)
        s = _conv_ref(x, wsq, stride, 0)
        s = act_quantize(_bn_ref(s, params["gamma_s"], params["beta_s"]), abit)
    else:
        s = x.astype(jnp.bfloat16).astype(jnp.float32)
    out = _conv_ref(x, w0q, stride, 1)
    out = jnp.maximum(act_quantize(_bn_ref(out, params["gamma0"], params["beta0"]), abit), 0.0)
    out = out.astype(jnp.bfloat16).astype(jnp.float32)
    out = _conv_ref(out, w1q, 1, 1)
    out = act_quantize(_bn_ref(out, params["gamma1"], params["beta1"]), abit)
    out = jnp.maximum(out + s, 0.0)
    return jnp.transpose(out, (0, 3, 1, 2))


# ----------------------------------------------------------------------------
def _make_params(key, in_planes, out_planes, with_skip):
    ks = jax.random.split(key, 9)
    p = {
        "w0": 0.3 * jax.random.normal(ks[0], (out_planes, in_planes, 3, 3), jnp.float32),
        "w1": 0.3 * jax.random.normal(ks[1], (out_planes, out_planes, 3, 3), jnp.float32),
        "gamma0": 1.0 + 0.1 * jax.random.normal(ks[2], (out_planes,), jnp.float32),
        "beta0": 0.05 * jax.random.normal(ks[3], (out_planes,), jnp.float32),
        "gamma1": 1.0 + 0.1 * jax.random.normal(ks[4], (out_planes,), jnp.float32),
        "beta1": 0.05 * jax.random.normal(ks[5], (out_planes,), jnp.float32),
    }
    if with_skip:
        p["ws"] = 0.3 * jax.random.normal(ks[6], (out_planes, in_planes, 1, 1), jnp.float32)
        p["gamma_s"] = 1.0 + 0.1 * jax.random.normal(ks[7], (out_planes,), jnp.float32)
        p["beta_s"] = 0.05 * jax.random.normal(ks[8], (out_planes,), jnp.float32)
    return p


if __name__ == "__main__":
    key = jax.random.PRNGKey(0)
    k_x, k_p, k_x1, k_p1 = jax.random.split(key, 4)

    wbit, abit = 4, 8   # 'stage' not modeled (see TODO above)

    # Case 1: stride=2 -> quantized skip_conv + fused skip_bn path, even/odd
    #         row-split stride-2 conv kernel, Cout=8 padded to 128 lanes.
    N, Cin, H, W = 2, 4, 16, 16
    Cout = 8
    x = jax.random.normal(k_x, (N, Cin, H, W), jnp.float32)
    params = _make_params(k_p, Cin, Cout, with_skip=True)
    out = jax.block_until_ready(
        preact_block_forward(x, params, stride=2, wbit=wbit, abit=abit))
    assert out.shape == (N, Cout, H // 2, W // 2), out.shape
    ref = preact_block_ref(x, params, stride=2, wbit=wbit, abit=abit)
    err_max = float(jnp.max(jnp.abs(out - ref)))
    err_mean = float(jnp.mean(jnp.abs(out - ref)))
    assert err_max < 0.12 and err_mean < 0.012, (err_max, err_mean)

    # Case 2: stride=1 identity shortcut, CIFAR-sized 32x32 spatial:
    #         per-image "parallel" grid + cross-image BN-stat reduction.
    N1, C1, H1, W1 = 2, 8, 32, 32
    x1 = jax.random.normal(k_x1, (N1, C1, H1, W1), jnp.float32)
    params1 = _make_params(k_p1, C1, C1, with_skip=False)
    out1 = jax.block_until_ready(
        preact_block_forward(x1, params1, stride=1, wbit=wbit, abit=abit))
    assert out1.shape == (N1, C1, H1, W1), out1.shape
    ref1 = preact_block_ref(x1, params1, stride=1, wbit=wbit, abit=abit)
    err1_max = float(jnp.max(jnp.abs(out1 - ref1)))
    err1_mean = float(jnp.mean(jnp.abs(out1 - ref1)))
    assert err1_max < 0.12 and err1_mean < 0.012, (err1_max, err1_mean)

    print("KERNEL_OK")
</pallas_src>

<mosaic_0001>
module attributes {stable_mosaic.version = 11 : i64} {
  func.func @kernel(%arg0: i32, %arg1: memref<128x128xbf16, #tpu.memory_space<vmem>>, %arg2: memref<1x128xf32, #tpu.memory_space<vmem>>, %arg3: memref<1x128xf32, #tpu.memory_space<vmem>>, %arg4: memref<128x128xbf16, #tpu.memory_space<vmem>>) attributes {dimension_semantics = [#tpu.dimension_semantics<parallel>], iteration_bounds = array<i64: 1>, scalar_prefetch = 0 : i64, scratch_operands = 0 : i64, tpu.core_type = #tpu.core_type<tc>, window_params = [{transform_indices = @transform_0, window_bounds = array<i64: 128, 128>}, {pipeline_mode = #tpu.pipeline_mode<synchronous>, transform_indices = @transform_1, window_bounds = array<i64: 1, 128>}, {pipeline_mode = #tpu.pipeline_mode<synchronous>, transform_indices = @transform_2, window_bounds = array<i64: 1, 128>}, {transform_indices = @transform_3, window_bounds = array<i64: 128, 128>}]} {
    %c0 = arith.constant 0 : index
    %c0_0 = arith.constant 0 : index
    %0 = vector.load %arg1[%c0, %c0_0] : memref<128x128xbf16, #tpu.memory_space<vmem>>, vector<128x128xbf16>
    %1 = arith.extf %0 : vector<128x128xbf16> to vector<128x128xf32>
    %c0_1 = arith.constant 0 : index
    %c0_2 = arith.constant 0 : index
    %2 = vector.load %arg2[%c0_1, %c0_2] : memref<1x128xf32, #tpu.memory_space<vmem>>, vector<1x128xf32>
    %3 = vector.broadcast %2 : vector<1x128xf32> to vector<128x128xf32>
    %4 = arith.mulf %1, %3 : vector<128x128xf32>
    %c0_3 = arith.constant 0 : index
    %c0_4 = arith.constant 0 : index
    %5 = vector.load %arg3[%c0_3, %c0_4] : memref<1x128xf32, #tpu.memory_space<vmem>>, vector<1x128xf32>
    %6 = vector.broadcast %5 : vector<1x128xf32> to vector<128x128xf32>
    %7 = arith.addf %4, %6 : vector<128x128xf32>
    %cst = arith.constant 0.000000e+00 : f32
    %cst_5 = arith.constant 1.000000e+00 : f32
    %8 = vector.broadcast %cst : f32 to vector<128x128xf32>
    %9 = arith.maximumf %8, %7 : vector<128x128xf32>
    %10 = vector.broadcast %cst_5 : f32 to vector<128x128xf32>
    %11 = arith.minimumf %10, %9 : vector<128x128xf32>
    %cst_6 = arith.constant 2.550000e+02 : f32
    %12 = vector.broadcast %cst_6 : f32 to vector<128x128xf32>
    %13 = arith.mulf %11, %12 : vector<128x128xf32>
    %14 = math.roundeven %13 : vector<128x128xf32>
    %cst_7 = arith.constant 2.550000e+02 : f32
    %15 = vector.broadcast %cst_7 : f32 to vector<128x128xf32>
    %16 = arith.divf %14, %15 : vector<128x128xf32>
    %cst_8 = arith.constant 0.000000e+00 : f32
    %17 = vector.broadcast %cst_8 : f32 to vector<128x128xf32>
    %18 = arith.maximumf %16, %17 : vector<128x128xf32>
    %19 = arith.truncf %18 : vector<128x128xf32> to vector<128x128xbf16>
    %c0_9 = arith.constant 0 : index
    %c0_10 = arith.constant 0 : index
    %20 = vector.load %arg4[%c0_9, %c0_10] : memref<128x128xbf16, #tpu.memory_space<vmem>>, vector<128x128xbf16>
    tpu.vector_store %arg4[%c0_9, %c0_10], %19 {strides = array<i32>} : memref<128x128xbf16, #tpu.memory_space<vmem>>, vector<128x128xbf16>,
    return
  }
  func.func @transform_0(%arg0: i32) -> (i32, i32) {
    %c0_i32 = arith.constant 0 : i32
    %c0_i32_0 = arith.constant 0 : i32
    return %arg0, %c0_i32 : i32, i32
  }
  func.func @transform_1(%arg0: i32) -> (i32, i32) {
    %c0_i32 = arith.constant 0 : i32
    %c0_i32_0 = arith.constant 0 : i32
    %c0_i32_1 = arith.constant 0 : i32
    return %c0_i32, %c0_i32_0 : i32, i32
  }
  func.func @transform_2(%arg0: i32) -> (i32, i32) {
    %c0_i32 = arith.constant 0 : i32
    %c0_i32_0 = arith.constant 0 : i32
    %c0_i32_1 = arith.constant 0 : i32
    return %c0_i32, %c0_i32_0 : i32, i32
  }
  func.func @transform_3(%arg0: i32) -> (i32, i32) {
    %c0_i32 = arith.constant 0 : i32
    %c0_i32_0 = arith.constant 0 : i32
    return %arg0, %c0_i32 : i32, i32
  }
}

module attributes {stable_mosaic.version = 11 : i64} {
  func.func @kernel(%arg0: i32, %arg1: memref<1x72x16xbf16, #tpu.memory_space<vmem>>, %arg2: memref<1x72x16xbf16, #tpu.memory_space<vmem>>, %arg3: memref<3x16x128xbf16, #tpu.memory_space<vmem>>, %arg4: memref<1x64x128xbf16, #tpu.memory_space<vmem>>, %arg5: memref<1x1x128xf32, #tpu.memory_space<vmem>>, %arg6: memref<1x1x128xf32, #tpu.memory_space<vmem>>) attributes {dimension_semantics = [#tpu.dimension_semantics<parallel>], iteration_bounds = array<i64: 2>, scalar_prefetch = 0 : i64, scratch_operands = 0 : i64, tpu.core_type = #tpu.core_type<tc>, window_params = [{transform_indices = @transform_0, window_bounds = array<i64: 1, 72, 16>}, {transform_indices = @transform_1, window_bounds = array<i64: 1, 72, 16>}, {pipeline_mode = #tpu.pipeline_mode<synchronous>, transform_indices = @transform_2, window_bounds = array<i64: 3, 16, 128>}, {transform_indices = @transform_3, window_bounds = array<i64: 1, 64, 128>}, {transform_indices = @transform_4, window_bounds = array<i64: 1, 1, 128>}, {transform_indices = @transform_5, window_bounds = array<i64: 1, 1, 128>}]} {
    %c0 = arith.constant 0 : index
    %c0_0 = arith.constant 0 : index
    %c0_1 = arith.constant 0 : index
    %0 = vector.load %arg1[%c0, %c0_0, %c0_1] : memref<1x72x16xbf16, #tpu.memory_space<vmem>>, vector<1x64x16xbf16>
    %1 = vector.shape_cast %0 : vector<1x64x16xbf16> to vector<64x16xbf16>
    %c0_2 = arith.constant 0 : index
    %c0_3 = arith.constant 0 : index
    %c0_4 = arith.constant 0 : index
    %2 = vector.load %arg3[%c0_2, %c0_3, %c0_4] : memref<3x16x128xbf16, #tpu.memory_space<vmem>>, vector<1x16x128xbf16>
    %3 = vector.shape_cast %2 : vector<1x16x128xbf16> to vector<16x128xbf16>
    %cst = arith.constant dense<0.000000e+00> : vector<64x128xf32>
    %4 = tpu.matmul %1, %3, %cst {dimension_numbers = #tpu.dot_dimension_numbers<[1], [0], [0], [1], [0, 0, 1, 1], [], []>} : vector<64x16xbf16>, vector<16x128xbf16>, vector<64x128xf32> -> vector<64x128xf32>
    %c0_5 = arith.constant 0 : index
    %c0_6 = arith.constant 0 : index
    %c0_7 = arith.constant 0 : index
    %5 = vector.load %arg2[%c0_5, %c0_6, %c0_7] : memref<1x72x16xbf16, #tpu.memory_space<vmem>>, vector<1x64x16xbf16>
    %6 = vector.shape_cast %5 : vector<1x64x16xbf16> to vector<64x16xbf16>
    %c1 = arith.constant 1 : index
    %c0_8 = arith.constant 0 : index
    %c0_9 = arith.constant 0 : index
    %7 = vector.load %arg3[%c1, %c0_8, %c0_9] : memref<3x16x128xbf16, #tpu.memory_space<vmem>>, vector<1x16x128xbf16>
    %8 = vector.shape_cast %7 : vector<1x16x128xbf16> to vector<16x128xbf16>
    %cst_10 = arith.constant dense<0.000000e+00> : vector<64x128xf32>
    %9 = tpu.matmul %6, %8, %cst_10 {dimension_numbers = #tpu.dot_dimension_numbers<[1], [0], [0], [1], [0, 0, 1, 1], [], []>} : vector<64x16xbf16>, vector<16x128xbf16>, vector<64x128xf32> -> vector<64x128xf32>
    %10 = arith.addf %4, %9 : vector<64x128xf32>
    %c0_11 = arith.constant 0 : index
    %c8 = arith.constant 8 : index
    %c0_12 = arith.constant 0 : index
    %11 = vector.load %arg1[%c0_11, %c8, %c0_12] : memref<1x72x16xbf16, #tpu.memory_space<vmem>>, vector<1x64x16xbf16>
    %12 = vector.shape_cast %11 : vector<1x64x16xbf16> to vector<64x16xbf16>
    %c2 = arith.constant 2 : index
    %c0_13 = arith.constant 0 : index
    %c0_14 = arith.constant 0 : index
    %13 = vector.load %arg3[%c2, %c0_13, %c0_14] : memref<3x16x128xbf16, #tpu.memory_space<vmem>>, vector<1x16x128xbf16>
    %14 = vector.shape_cast %13 : vector<1x16x128xbf16> to vector<16x128xbf16>
    %cst_15 = arith.constant dense<0.000000e+00> : vector<64x128xf32>
    %15 = tpu.matmul %12, %14, %cst_15 {dimension_numbers = #tpu.dot_dimension_numbers<[1], [0], [0], [1], [0, 0, 1, 1], [], []>} : vector<64x16xbf16>, vector<16x128xbf16>, vector<64x128xf32> -> vector<64x128xf32>
    %16 = arith.addf %10, %15 : vector<64x128xf32>
    %17 = arith.truncf %16 : vector<64x128xf32> to vector<64x128xbf16>
    %c0_16 = arith.constant 0 : index
    %c0_17 = arith.constant 0 : index
    %c0_18 = arith.constant 0 : index
    %18 = vector.load %arg4[%c0_16, %c0_17, %c0_18] : memref<1x64x128xbf16, #tpu.memory_space<vmem>>, vector<1x64x128xbf16>
    %19 = vector.shape_cast %18 : vector<1x64x128xbf16> to vector<64x128xbf16>
    %20 = vector.shape_cast %17 : vector<64x128xbf16> to vector<1x64x128xbf16>
    tpu.vector_store %arg4[%c0_16, %c0_17, %c0_18], %20 {strides = array<i32>} : memref<1x64x128xbf16, #tpu.memory_space<vmem>>, vector<1x64x128xbf16>,
    %cst_19 = arith.constant dense<0.000000e+00> : vector<128xf32>
    %21 = vector.multi_reduction <add>, %16, %cst_19 [0] : vector<64x128xf32> to vector<128xf32>
    %22 = vector.shape_cast %21 : vector<128xf32> to vector<1x128xf32>
    %c0_20 = arith.constant 0 : index
    %c0_21 = arith.constant 0 : index
    %c0_22 = arith.constant 0 : index
    %23 = vector.load %arg5[%c0_20, %c0_21, %c0_22] : memref<1x1x128xf32, #tpu.memory_space<vmem>>, vector<1x1x128xf32>
    %24 = vector.shape_cast %23 : vector<1x1x128xf32> to vector<1x128xf32>
    %25 = vector.shape_cast %22 : vector<1x128xf32> to vector<1x1x128xf32>
    tpu.vector_store %arg5[%c0_20, %c0_21, %c0_22], %25 {strides = array<i32>} : memref<1x1x128xf32, #tpu.memory_space<vmem>>, vector<1x1x128xf32>,
    %26 = arith.mulf %16, %16 : vector<64x128xf32>
    %cst_23 = arith.constant dense<0.000000e+00> : vector<128xf32>
    %27 = vector.multi_reduction <add>, %26, %cst_23 [0] : vector<64x128xf32> to vector<128xf32>
    %28 = vector.shape_cast %27 : vector<128xf32> to vector<1x128xf32>
    %c0_24 = arith.constant 0 : index
    %c0_25 = arith.constant 0 : index
    %c0_26 = arith.constant 0 : index
    %29 = vector.load %arg6[%c0_24, %c0_25, %c0_26] : memref<1x1x128xf32, #tpu.memory_space<vmem>>, vector<1x1x128xf32>
    %30 = vector.shape_cast %29 : vector<1x1x128xf32> to vector<1x128xf32>
    %31 = vector.shape_cast %28 : vector<1x128xf32> to vector<1x1x128xf32>
    tpu.vector_store %arg6[%c0_24, %c0_25, %c0_26], %31 {strides = array<i32>} : memref<1x1x128xf32, #tpu.memory_space<vmem>>, vector<1x1x128xf32>,
    return
  }
  func.func @transform_0(%arg0: i32) -> (i32, i32, i32) {
    %c0_i32 = arith.constant 0 : i32
    %c0_i32_0 = arith.constant 0 : i32
    %c0_i32_1 = arith.constant 0 : i32
    return %arg0, %c0_i32, %c0_i32_0 : i32, i32, i32
  }
  func.func @transform_1(%arg0: i32) -> (i32, i32, i32) {
    %c0_i32 = arith.constant 0 : i32
    %c0_i32_0 = arith.constant 0 : i32
    %c0_i32_1 = arith.constant 0 : i32
    return %arg0, %c0_i32, %c0_i32_0 : i32, i32, i32
  }
  func.func @transform_2(%arg0: i32) -> (i32, i32, i32) {
    %c0_i32 = arith.constant 0 : i32
    %c0_i32_0 = arith.constant 0 : i32
    %c0_i32_1 = arith.constant 0 : i32
    %c0_i32_2 = arith.constant 0 : i32
    return %c0_i32, %c0_i32_0, %c0_i32_1 : i32, i32, i32
  }
  func.func @transform_3(%arg0: i32) -> (i32, i32, i32) {
    %c0_i32 = arith.constant 0 : i32
    %c0_i32_0 = arith.constant 0 : i32
    %c0_i32_1 = arith.constant 0 : i32
    return %arg0, %c0_i32, %c0_i32_0 : i32, i32, i32
  }
  func.func @transform_4(%arg0: i32) -> (i32, i32, i32) {
    %c0_i32 = arith.constant 0 : i32
    %c0_i32_0 = arith.constant 0 : i32
    %c0_i32_1 = arith.constant 0 : i32
    return %arg0, %c0_i32, %c0_i32_0 : i32, i32, i32
  }
  func.func @transform_5(%arg0: i32) -> (i32, i32, i32) {
    %c0_i32 = arith.constant 0 : i32
    %c0_i32_0 = arith.constant 0 : i32
    %c0_i32_1 = arith.constant 0 : i32
    return %arg0, %c0_i32, %c0_i32_0 : i32, i32, i32
  }
}

module attributes {stable_mosaic.version = 11 : i64} {
  func.func @kernel(%arg0: i32, %arg1: memref<1x80x24xbf16, #tpu.memory_space<vmem>>, %arg2: memref<3x24x128xbf16, #tpu.memory_space<vmem>>, %arg3: memref<1x64x128xbf16, #tpu.memory_space<vmem>>, %arg4: memref<1x1x128xf32, #tpu.memory_space<vmem>>, %arg5: memref<1x1x128xf32, #tpu.memory_space<vmem>>) attributes {dimension_semantics = [#tpu.dimension_semantics<parallel>], iteration_bounds = array<i64: 2>, scalar_prefetch = 0 : i64, scratch_operands = 0 : i64, tpu.core_type = #tpu.core_type<tc>, window_params = [{transform_indices = @transform_0, window_bounds = array<i64: 1, 80, 24>}, {pipeline_mode = #tpu.pipeline_mode<synchronous>, transform_indices = @transform_1, window_bounds = array<i64: 3, 24, 128>}, {transform_indices = @transform_2, window_bounds = array<i64: 1, 64, 128>}, {transform_indices = @transform_3, window_bounds = array<i64: 1, 1, 128>}, {transform_indices = @transform_4, window_bounds = array<i64: 1, 1, 128>}]} {
    %c0 = arith.constant 0 : index
    %c0_0 = arith.constant 0 : index
    %c0_1 = arith.constant 0 : index
    %0 = vector.load %arg1[%c0, %c0_0, %c0_1] : memref<1x80x24xbf16, #tpu.memory_space<vmem>>, vector<1x64x24xbf16>
    %1 = vector.shape_cast %0 : vector<1x64x24xbf16> to vector<64x24xbf16>
    %c0_2 = arith.constant 0 : index
    %c0_3 = arith.constant 0 : index
    %c0_4 = arith.constant 0 : index
    %2 = vector.load %arg2[%c0_2, %c0_3, %c0_4] : memref<3x24x128xbf16, #tpu.memory_space<vmem>>, vector<1x24x128xbf16>
    %3 = vector.shape_cast %2 : vector<1x24x128xbf16> to vector<24x128xbf16>
    %cst = arith.constant dense<0.000000e+00> : vector<64x128xf32>
    %4 = tpu.matmul %1, %3, %cst {dimension_numbers = #tpu.dot_dimension_numbers<[1], [0], [0], [1], [0, 0, 1, 1], [], []>} : vector<64x24xbf16>, vector<24x128xbf16>, vector<64x128xf32> -> vector<64x128xf32>
    %c0_5 = arith.constant 0 : index
    %c8 = arith.constant 8 : index
    %c0_6 = arith.constant 0 : index
    %5 = vector.load %arg1[%c0_5, %c8, %c0_6] : memref<1x80x24xbf16, #tpu.memory_space<vmem>>, vector<1x64x24xbf16>
    %6 = vector.shape_cast %5 : vector<1x64x24xbf16> to vector<64x24xbf16>
    %c1 = arith.constant 1 : index
    %c0_7 = arith.constant 0 : index
    %c0_8 = arith.constant 0 : index
    %7 = vector.load %arg2[%c1, %c0_7, %c0_8] : memref<3x24x128xbf16, #tpu.memory_space<vmem>>, vector<1x24x128xbf16>
    %8 = vector.shape_cast %7 : vector<1x24x128xbf16> to vector<24x128xbf16>
    %cst_9 = arith.constant dense<0.000000e+00> : vector<64x128xf32>
    %9 = tpu.matmul %6, %8, %cst_9 {dimension_numbers = #tpu.dot_dimension_numbers<[1], [0], [0], [1], [0, 0, 1, 1], [], []>} : vector<64x24xbf16>, vector<24x128xbf16>, vector<64x128xf32> -> vector<64x128xf32>
    %10 = arith.addf %4, %9 : vector<64x128xf32>
    %c0_10 = arith.constant 0 : index
    %c16 = arith.constant 16 : index
    %c0_11 = arith.constant 0 : index
    %11 = vector.load %arg1[%c0_10, %c16, %c0_11] : memref<1x80x24xbf16, #tpu.memory_space<vmem>>, vector<1x64x24xbf16>
    %12 = vector.shape_cast %11 : vector<1x64x24xbf16> to vector<64x24xbf16>
    %c2 = arith.constant 2 : index
    %c0_12 = arith.constant 0 : index
    %c0_13 = arith.constant 0 : index
    %13 = vector.load %arg2[%c2, %c0_12, %c0_13] : memref<3x24x128xbf16, #tpu.memory_space<vmem>>, vector<1x24x128xbf16>
    %14 = vector.shape_cast %13 : vector<1x24x128xbf16> to vector<24x128xbf16>
    %cst_14 = arith.constant dense<0.000000e+00> : vector<64x128xf32>
    %15 = tpu.matmul %12, %14, %cst_14 {dimension_numbers = #tpu.dot_dimension_numbers<[1], [0], [0], [1], [0, 0, 1, 1], [], []>} : vector<64x24xbf16>, vector<24x128xbf16>, vector<64x128xf32> -> vector<64x128xf32>
    %16 = arith.addf %10, %15 : vector<64x128xf32>
    %17 = arith.truncf %16 : vector<64x128xf32> to vector<64x128xbf16>
    %c0_15 = arith.constant 0 : index
    %c0_16 = arith.constant 0 : index
    %c0_17 = arith.constant 0 : index
    %18 = vector.load %arg3[%c0_15, %c0_16, %c0_17] : memref<1x64x128xbf16, #tpu.memory_space<vmem>>, vector<1x64x128xbf16>
    %19 = vector.shape_cast %18 : vector<1x64x128xbf16> to vector<64x128xbf16>
    %20 = vector.shape_cast %17 : vector<64x128xbf16> to vector<1x64x128xbf16>
    tpu.vector_store %arg3[%c0_15, %c0_16, %c0_17], %20 {strides = array<i32>} : memref<1x64x128xbf16, #tpu.memory_space<vmem>>, vector<1x64x128xbf16>,
    %cst_18 = arith.constant dense<0.000000e+00> : vector<128xf32>
    %21 = vector.multi_reduction <add>, %16, %cst_18 [0] : vector<64x128xf32> to vector<128xf32>
    %22 = vector.shape_cast %21 : vector<128xf32> to vector<1x128xf32>
    %c0_19 = arith.constant 0 : index
    %c0_20 = arith.constant 0 : index
    %c0_21 = arith.constant 0 : index
    %23 = vector.load %arg4[%c0_19, %c0_20, %c0_21] : memref<1x1x128xf32, #tpu.memory_space<vmem>>, vector<1x1x128xf32>
    %24 = vector.shape_cast %23 : vector<1x1x128xf32> to vector<1x128xf32>
    %25 = vector.shape_cast %22 : vector<1x128xf32> to vector<1x1x128xf32>
    tpu.vector_store %arg4[%c0_19, %c0_20, %c0_21], %25 {strides = array<i32>} : memref<1x1x128xf32, #tpu.memory_space<vmem>>, vector<1x1x128xf32>,
    %26 = arith.mulf %16, %16 : vector<64x128xf32>
    %cst_22 = arith.constant dense<0.000000e+00> : vector<128xf32>
    %27 = vector.multi_reduction <add>, %26, %cst_22 [0] : vector<64x128xf32> to vector<128xf32>
    %28 = vector.shape_cast %27 : vector<128xf32> to vector<1x128xf32>
    %c0_23 = arith.constant 0 : index
    %c0_24 = arith.constant 0 : index
    %c0_25 = arith.constant 0 : index
    %29 = vector.load %arg5[%c0_23, %c0_24, %c0_25] : memref<1x1x128xf32, #tpu.memory_space<vmem>>, vector<1x1x128xf32>
    %30 = vector.shape_cast %29 : vector<1x1x128xf32> to vector<1x128xf32>
    %31 = vector.shape_cast %28 : vector<1x128xf32> to vector<1x1x128xf32>
    tpu.vector_store %arg5[%c0_23, %c0_24, %c0_25], %31 {strides = array<i32>} : memref<1x1x128xf32, #tpu.memory_space<vmem>>, vector<1x1x128xf32>,
    return
  }
  func.func @transform_0(%arg0: i32) -> (i32, i32, i32) {
    %c0_i32 = arith.constant 0 : i32
    %c0_i32_0 = arith.constant 0 : i32
    %c0_i32_1 = arith.constant 0 : i32
    return %arg0, %c0_i32, %c0_i32_0 : i32, i32, i32
  }
  func.func @transform_1(%arg0: i32) -> (i32, i32, i32) {
    %c0_i32 = arith.constant 0 : i32
    %c0_i32_0 = arith.constant 0 : i32
    %c0_i32_1 = arith.constant 0 : i32
    %c0_i32_2 = arith.constant 0 : i32
    return %c0_i32, %c0_i32_0, %c0_i32_1 : i32, i32, i32
  }
  func.func @transform_2(%arg0: i32) -> (i32, i32, i32) {
    %c0_i32 = arith.constant 0 : i32
    %c0_i32_0 = arith.constant 0 : i32
    %c0_i32_1 = arith.constant 0 : i32
    return %arg0, %c0_i32, %c0_i32_0 : i32, i32, i32
  }
  func.func @transform_3(%arg0: i32) -> (i32, i32, i32) {
    %c0_i32 = arith.constant 0 : i32
    %c0_i32_0 = arith.constant 0 : i32
    %c0_i32_1 = arith.constant 0 : i32
    return %arg0, %c0_i32, %c0_i32_0 : i32, i32, i32
  }
  func.func @transform_4(%arg0: i32) -> (i32, i32, i32) {
    %c0_i32 = arith.constant 0 : i32
    %c0_i32_0 = arith.constant 0 : i32
    %c0_i32_1 = arith.constant 0 : i32
    return %arg0, %c0_i32, %c0_i32_0 : i32, i32, i32
  }
}

module attributes {stable_mosaic.version = 11 : i64} {
  func.func @kernel(%arg0: i32, %arg1: memref<1x64x8xbf16, #tpu.memory_space<vmem>>, %arg2: memref<1x8x128xbf16, #tpu.memory_space<vmem>>, %arg3: memref<1x64x128xbf16, #tpu.memory_space<vmem>>, %arg4: memref<1x1x128xf32, #tpu.memory_space<vmem>>, %arg5: memref<1x1x128xf32, #tpu.memory_space<vmem>>) attributes {dimension_semantics = [#tpu.dimension_semantics<parallel>], iteration_bounds = array<i64: 2>, scalar_prefetch = 0 : i64, scratch_operands = 0 : i64, tpu.core_type = #tpu.core_type<tc>, window_params = [{transform_indices = @transform_0, window_bounds = array<i64: 1, 64, 8>}, {pipeline_mode = #tpu.pipeline_mode<synchronous>, transform_indices = @transform_1, window_bounds = array<i64: 1, 8, 128>}, {transform_indices = @transform_2, window_bounds = array<i64: 1, 64, 128>}, {transform_indices = @transform_3, window_bounds = array<i64: 1, 1, 128>}, {transform_indices = @transform_4, window_bounds = array<i64: 1, 1, 128>}]} {
    %c0 = arith.constant 0 : index
    %c0_0 = arith.constant 0 : index
    %c0_1 = arith.constant 0 : index
    %0 = vector.load %arg1[%c0, %c0_0, %c0_1] : memref<1x64x8xbf16, #tpu.memory_space<vmem>>, vector<1x64x8xbf16>
    %1 = vector.shape_cast %0 : vector<1x64x8xbf16> to vector<64x8xbf16>
    %c0_2 = arith.constant 0 : index
    %c0_3 = arith.constant 0 : index
    %c0_4 = arith.constant 0 : index
    %2 = vector.load %arg2[%c0_2, %c0_3, %c0_4] : memref<1x8x128xbf16, #tpu.memory_space<vmem>>, vector<1x8x128xbf16>
    %3 = vector.shape_cast %2 : vector<1x8x128xbf16> to vector<8x128xbf16>
    %cst = arith.constant dense<0.000000e+00> : vector<64x128xf32>
    %4 = tpu.matmul %1, %3, %cst {dimension_numbers = #tpu.dot_dimension_numbers<[1], [0], [0], [1], [0, 0, 1, 1], [], []>} : vector<64x8xbf16>, vector<8x128xbf16>, vector<64x128xf32> -> vector<64x128xf32>
    %5 = arith.truncf %4 : vector<64x128xf32> to vector<64x128xbf16>
    %c0_5 = arith.constant 0 : index
    %c0_6 = arith.constant 0 : index
    %c0_7 = arith.constant 0 : index
    %6 = vector.load %arg3[%c0_5, %c0_6, %c0_7] : memref<1x64x128xbf16, #tpu.memory_space<vmem>>, vector<1x64x128xbf16>
    %7 = vector.shape_cast %6 : vector<1x64x128xbf16> to vector<64x128xbf16>
    %8 = vector.shape_cast %5 : vector<64x128xbf16> to vector<1x64x128xbf16>
    tpu.vector_store %arg3[%c0_5, %c0_6, %c0_7], %8 {strides = array<i32>} : memref<1x64x128xbf16, #tpu.memory_space<vmem>>, vector<1x64x128xbf16>,
    %cst_8 = arith.constant dense<0.000000e+00> : vector<128xf32>
    %9 = vector.multi_reduction <add>, %4, %cst_8 [0] : vector<64x128xf32> to vector<128xf32>
    %10 = vector.shape_cast %9 : vector<128xf32> to vector<1x128xf32>
    %c0_9 = arith.constant 0 : index
    %c0_10 = arith.constant 0 : index
    %c0_11 = arith.constant 0 : index
    %11 = vector.load %arg4[%c0_9, %c0_10, %c0_11] : memref<1x1x128xf32, #tpu.memory_space<vmem>>, vector<1x1x128xf32>
    %12 = vector.shape_cast %11 : vector<1x1x128xf32> to vector<1x128xf32>
    %13 = vector.shape_cast %10 : vector<1x128xf32> to vector<1x1x128xf32>
    tpu.vector_store %arg4[%c0_9, %c0_10, %c0_11], %13 {strides = array<i32>} : memref<1x1x128xf32, #tpu.memory_space<vmem>>, vector<1x1x128xf32>,
    %14 = arith.mulf %4, %4 : vector<64x128xf32>
    %cst_12 = arith.constant dense<0.000000e+00> : vector<128xf32>
    %15 = vector.multi_reduction <add>, %14, %cst_12 [0] : vector<64x128xf32> to vector<128xf32>
    %16 = vector.shape_cast %15 : vector<128xf32> to vector<1x128xf32>
    %c0_13 = arith.constant 0 : index
    %c0_14 = arith.constant 0 : index
    %c0_15 = arith.constant 0 : index
    %17 = vector.load %arg5[%c0_13, %c0_14, %c0_15] : memref<1x1x128xf32, #tpu.memory_space<vmem>>, vector<1x1x128xf32>
    %18 = vector.shape_cast %17 : vector<1x1x128xf32> to vector<1x128xf32>
    %19 = vector.shape_cast %16 : vector<1x128xf32> to vector<1x1x128xf32>
    tpu.vector_store %arg5[%c0_13, %c0_14, %c0_15], %19 {strides = array<i32>} : memref<1x1x128xf32, #tpu.memory_space<vmem>>, vector<1x1x128xf32>,
    return
  }
  func.func @transform_0(%arg0: i32) -> (i32, i32, i32) {
    %c0_i32 = arith.constant 0 : i32
    %c0_i32_0 = arith.constant 0 : i32
    %c0_i32_1 = arith.constant 0 : i32
    return %arg0, %c0_i32, %c0_i32_0 : i32, i32, i32
  }
  func.func @transform_1(%arg0: i32) -> (i32, i32, i32) {
    %c0_i32 = arith.constant 0 : i32
    %c0_i32_0 = arith.constant 0 : i32
    %c0_i32_1 = arith.constant 0 : i32
    %c0_i32_2 = arith.constant 0 : i32
    return %c0_i32, %c0_i32_0, %c0_i32_1 : i32, i32, i32
  }
  func.func @transform_2(%arg0: i32) -> (i32, i32, i32) {
    %c0_i32 = arith.constant 0 : i32
    %c0_i32_0 = arith.constant 0 : i32
    %c0_i32_1 = arith.constant 0 : i32
    return %arg0, %c0_i32, %c0_i32_0 : i32, i32, i32
  }
  func.func @transform_3(%arg0: i32) -> (i32, i32, i32) {
    %c0_i32 = arith.constant 0 : i32
    %c0_i32_0 = arith.constant 0 : i32
    %c0_i32_1 = arith.constant 0 : i32
    return %arg0, %c0_i32, %c0_i32_0 : i32, i32, i32
  }
  func.func @transform_4(%arg0: i32) -> (i32, i32, i32) {
    %c0_i32 = arith.constant 0 : i32
    %c0_i32_0 = arith.constant 0 : i32
    %c0_i32_1 = arith.constant 0 : i32
    return %arg0, %c0_i32, %c0_i32_0 : i32, i32, i32
  }
}

module attributes {stable_mosaic.version = 11 : i64} {
  func.func @kernel(%arg0: i32, %arg1: memref<128x128xbf16, #tpu.memory_space<vmem>>, %arg2: memref<1x128xf32, #tpu.memory_space<vmem>>, %arg3: memref<1x128xf32, #tpu.memory_space<vmem>>, %arg4: memref<128x128xbf16, #tpu.memory_space<vmem>>, %arg5: memref<1x128xf32, #tpu.memory_space<vmem>>, %arg6: memref<1x128xf32, #tpu.memory_space<vmem>>, %arg7: memref<128x128xf32, #tpu.memory_space<vmem>>) attributes {dimension_semantics = [#tpu.dimension_semantics<parallel>], iteration_bounds = array<i64: 1>, scalar_prefetch = 0 : i64, scratch_operands = 0 : i64, tpu.core_type = #tpu.core_type<tc>, window_params = [{transform_indices = @transform_0, window_bounds = array<i64: 128, 128>}, {pipeline_mode = #tpu.pipeline_mode<synchronous>, transform_indices = @transform_1, window_bounds = array<i64: 1, 128>}, {pipeline_mode = #tpu.pipeline_mode<synchronous>, transform_indices = @transform_2, window_bounds = array<i64: 1, 128>}, {transform_indices = @transform_3, window_bounds = array<i64: 128, 128>}, {pipeline_mode = #tpu.pipeline_mode<synchronous>, transform_indices = @transform_4, window_bounds = array<i64: 1, 128>}, {pipeline_mode = #tpu.pipeline_mode<synchronous>, transform_indices = @transform_5, window_bounds = array<i64: 1, 128>}, {transform_indices = @transform_6, window_bounds = array<i64: 128, 128>}]} {
    %c0 = arith.constant 0 : index
    %c0_0 = arith.constant 0 : index
    %0 = vector.load %arg1[%c0, %c0_0] : memref<128x128xbf16, #tpu.memory_space<vmem>>, vector<128x128xbf16>
    %1 = arith.extf %0 : vector<128x128xbf16> to vector<128x128xf32>
    %c0_1 = arith.constant 0 : index
    %c0_2 = arith.constant 0 : index
    %2 = vector.load %arg2[%c0_1, %c0_2] : memref<1x128xf32, #tpu.memory_space<vmem>>, vector<1x128xf32>
    %3 = vector.broadcast %2 : vector<1x128xf32> to vector<128x128xf32>
    %4 = arith.mulf %1, %3 : vector<128x128xf32>
    %c0_3 = arith.constant 0 : index
    %c0_4 = arith.constant 0 : index
    %5 = vector.load %arg3[%c0_3, %c0_4] : memref<1x128xf32, #tpu.memory_space<vmem>>, vector<1x128xf32>
    %6 = vector.broadcast %5 : vector<1x128xf32> to vector<128x128xf32>
    %7 = arith.addf %4, %6 : vector<128x128xf32>
    %cst = arith.constant 0.000000e+00 : f32
    %cst_5 = arith.constant 1.000000e+00 : f32
    %8 = vector.broadcast %cst : f32 to vector<128x128xf32>
    %9 = arith.maximumf %8, %7 : vector<128x128xf32>
    %10 = vector.broadcast %cst_5 : f32 to vector<128x128xf32>
    %11 = arith.minimumf %10, %9 : vector<128x128xf32>
    %cst_6 = arith.constant 2.550000e+02 : f32
    %12 = vector.broadcast %cst_6 : f32 to vector<128x128xf32>
    %13 = arith.mulf %11, %12 : vector<128x128xf32>
    %14 = math.roundeven %13 : vector<128x128xf32>
    %cst_7 = arith.constant 2.550000e+02 : f32
    %15 = vector.broadcast %cst_7 : f32 to vector<128x128xf32>
    %16 = arith.divf %14, %15 : vector<128x128xf32>
    %c0_8 = arith.constant 0 : index
    %c0_9 = arith.constant 0 : index
    %17 = vector.load %arg4[%c0_8, %c0_9] : memref<128x128xbf16, #tpu.memory_space<vmem>>, vector<128x128xbf16>
    %18 = arith.extf %17 : vector<128x128xbf16> to vector<128x128xf32>
    %c0_10 = arith.constant 0 : index
    %c0_11 = arith.constant 0 : index
    %19 = vector.load %arg5[%c0_10, %c0_11] : memref<1x128xf32, #tpu.memory_space<vmem>>, vector<1x128xf32>
    %20 = vector.broadcast %19 : vector<1x128xf32> to vector<128x128xf32>
    %21 = arith.mulf %18, %20 : vector<128x128xf32>
    %c0_12 = arith.constant 0 : index
    %c0_13 = arith.constant 0 : index
    %22 = vector.load %arg6[%c0_12, %c0_13] : memref<1x128xf32, #tpu.memory_space<vmem>>, vector<1x128xf32>
    %23 = vector.broadcast %22 : vector<1x128xf32> to vector<128x128xf32>
    %24 = arith.addf %21, %23 : vector<128x128xf32>
    %cst_14 = arith.constant 0.000000e+00 : f32
    %cst_15 = arith.constant 1.000000e+00 : f32
    %25 = vector.broadcast %cst_14 : f32 to vector<128x128xf32>
    %26 = arith.maximumf %25, %24 : vector<128x128xf32>
    %27 = vector.broadcast %cst_15 : f32 to vector<128x128xf32>
    %28 = arith.minimumf %27, %26 : vector<128x128xf32>
    %cst_16 = arith.constant 2.550000e+02 : f32
    %29 = vector.broadcast %cst_16 : f32 to vector<128x128xf32>
    %30 = arith.mulf %28, %29 : vector<128x128xf32>
    %31 = math.roundeven %30 : vector<128x128xf32>
    %cst_17 = arith.constant 2.550000e+02 : f32
    %32 = vector.broadcast %cst_17 : f32 to vector<128x128xf32>
    %33 = arith.divf %31, %32 : vector<128x128xf32>
    %34 = arith.addf %16, %33 : vector<128x128xf32>
    %cst_18 = arith.constant 0.000000e+00 : f32
    %35 = vector.broadcast %cst_18 : f32 to vector<128x128xf32>
    %36 = arith.maximumf %34, %35 : vector<128x128xf32>
    %c0_19 = arith.constant 0 : index
    %c0_20 = arith.constant 0 : index
    %37 = vector.load %arg7[%c0_19, %c0_20] : memref<128x128xf32, #tpu.memory_space<vmem>>, vector<128x128xf32>
    tpu.vector_store %arg7[%c0_19, %c0_20], %36 {strides = array<i32>} : memref<128x128xf32, #tpu.memory_space<vmem>>, vector<128x128xf32>,
    return
  }
  func.func @transform_0(%arg0: i32) -> (i32, i32) {
    %c0_i32 = arith.constant 0 : i32
    %c0_i32_0 = arith.constant 0 : i32
    return %arg0, %c0_i32 : i32, i32
  }
  func.func @transform_1(%arg0: i32) -> (i32, i32) {
    %c0_i32 = arith.constant 0 : i32
    %c0_i32_0 = arith.constant 0 : i32
    %c0_i32_1 = arith.constant 0 : i32
    return %c0_i32, %c0_i32_0 : i32, i32
  }
  func.func @transform_2(%arg0: i32) -> (i32, i32) {
    %c0_i32 = arith.constant 0 : i32
    %c0_i32_0 = arith.constant 0 : i32
    %c0_i32_1 = arith.constant 0 : i32
    return %c0_i32, %c0_i32_0 : i32, i32
  }
  func.func @transform_3(%arg0: i32) -> (i32, i32) {
    %c0_i32 = arith.constant 0 : i32
    %c0_i32_0 = arith.constant 0 : i32
    return %arg0, %c0_i32 : i32, i32
  }
  func.func @transform_4(%arg0: i32) -> (i32, i32) {
    %c0_i32 = arith.constant 0 : i32
    %c0_i32_0 = arith.constant 0 : i32
    %c0_i32_1 = arith.constant 0 : i32
    return %c0_i32, %c0_i32_0 : i32, i32
  }
  func.func @transform_5(%arg0: i32) -> (i32, i32) {
    %c0_i32 = arith.constant 0 : i32
    %c0_i32_0 = arith.constant 0 : i32
    %c0_i32_1 = arith.constant 0 : i32
    return %c0_i32, %c0_i32_0 : i32, i32
  }
  func.func @transform_6(%arg0: i32) -> (i32, i32) {
    %c0_i32 = arith.constant 0 : i32
    %c0_i32_0 = arith.constant 0 : i32
    return %arg0, %c0_i32 : i32, i32
  }
}

</mosaic_0001>

<llo_original>
// kernel: preact_block_forward.7
$region0: #{preact_block_forward.7}
  #allocation0 [shape = 'u32[]', space=smem, size = 0x4, offset = 0x4, fixed_abs, tag = 'smem constant byte address 0x4 - core index']
  #allocation1 [shape = 'u32[72,128]{1,0:T(1,128)}', space=vmem, size = 0x9000, scoped, tag = 'internal scratch']
  %s0 = inlined_call_operand.vmem [shape: bf16[128,128], index: 0, kind: input, shape index: {}]
  %s1 = inlined_call_operand.vmem [shape: f32[1,128], index: 1, kind: input, shape index: {}]
  %s2 = inlined_call_operand.vmem [shape: f32[1,128], index: 2, kind: input, shape index: {}]
  %s3 = inlined_call_operand.vmem [shape: bf16[128,128], index: 3, kind: output, shape index: {}]
  %s4 = sld [smem:[#allocation0]]
  $region22: #{preact_block_forward.7} parent=0
    _
  %s6 = ssub.s32 1, %s4
  %s7 = scalar_select 0, %s6, %s4
  // Predicated region
  $region2: #{preact_block_forward.7} parent=0 // pred_check
    _
  $region3: #{preact_block_forward.7} parent=0 // pred_check_branch
    %9 = sbr.rel (0) target = $region5
  $region4: #{preact_block_forward.7} parent=0 // pred_region
    _
  $region5: #{preact_block_forward.7} parent=0 // pred_fallthru
    _
  // Predicated region
  $region6: #{preact_block_forward.7} parent=0 // pred_check
    _
  $region7: #{preact_block_forward.7} parent=0 // pred_check_branch
    %11 = sbr.rel (0) target = $region9
  $region8: #{preact_block_forward.7} parent=0 // pred_region
    _
  $region9: #{preact_block_forward.7} parent=0 // pred_fallthru
    _
  // Predicated region
  $region10: #{preact_block_forward.7} parent=0 // pred_check
    _
  $region11: #{preact_block_forward.7} parent=0 // pred_check_branch
    %13 = sbr.rel (0) target = $region13
  $region12: #{preact_block_forward.7} parent=0 // pred_region
    _
  $region13: #{preact_block_forward.7} parent=0 // pred_fallthru
    _
  %v14 = vld [vmem:[%s0] sm:$0xf]
  %v15 = vld [vmem:[%s0 + $0x4] sm:$0xf]
  %v16 = vld [vmem:[%s0 + $0x8] sm:$0xf]
  %v17 = vld [vmem:[%s0 + $0xc] sm:$0xf]
  %v18 = vld [vmem:[%s0 + $0x10] sm:$0xf]
  %v19 = vld [vmem:[%s0 + $0x14] sm:$0xf]
  %v20 = vld [vmem:[%s0 + $0x18] sm:$0xf]
  %v21 = vld [vmem:[%s0 + $0x1c] sm:$0xf]
  %v22 = vld [vmem:[%s0 + $0x20] sm:$0xf]
  %v23 = vld [vmem:[%s0 + $0x24] sm:$0xf]
  %v24 = vld [vmem:[%s0 + $0x28] sm:$0xf]
  %v25 = vld [vmem:[%s0 + $0x2c] sm:$0xf]
  %v26 = vld [vmem:[%s0 + $0x30] sm:$0xf]
  %v27 = vld [vmem:[%s0 + $0x34] sm:$0xf]
  %v28 = vld [vmem:[%s0 + $0x38] sm:$0xf]
  %v29 = vld [vmem:[%s0 + $0x3c] sm:$0xf]
  %v30 = vunpack.c.l.bf16 %v14
  %v31 = vunpack.c.l.bf16 %v15
  %v32 = vunpack.c.l.bf16 %v16
  %v33 = vunpack.c.l.bf16 %v17
  %v34 = vunpack.c.l.bf16 %v18
  %v35 = vunpack.c.l.bf16 %v19
  %v36 = vunpack.c.l.bf16 %v20
  %v37 = vunpack.c.l.bf16 %v21
  %v38 = vunpack.c.l.bf16 %v22
  %v39 = vunpack.c.l.bf16 %v23
  %v40 = vunpack.c.l.bf16 %v24
  %v41 = vunpack.c.l.bf16 %v25
  %v42 = vunpack.c.l.bf16 %v26
  %v43 = vunpack.c.l.bf16 %v27
  %v44 = vunpack.c.l.bf16 %v28
  %v45 = vunpack.c.l.bf16 %v29
  %v46 = vld [vmem:[%s1] sm:$0x1]
  %v48 = vperm.slane %v46, 0
  %v50 = vmul.f32 %v30, %v48
  %v51 = vmul.f32 %v31, %v48
  %v52 = vmul.f32 %v32, %v48
  %v53 = vmul.f32 %v33, %v48
  %v54 = vmul.f32 %v34, %v48
  %v55 = vmul.f32 %v35, %v48
  %v56 = vmul.f32 %v36, %v48
  %v57 = vmul.f32 %v37, %v48
  %v58 = vmul.f32 %v38, %v48
  %v59 = vmul.f32 %v39, %v48
  %v60 = vmul.f32 %v40, %v48
  %v61 = vmul.f32 %v41, %v48
  %v62 = vmul.f32 %v42, %v48
  %v63 = vmul.f32 %v43, %v48
  %v64 = vmul.f32 %v44, %v48
  %v65 = vmul.f32 %v45, %v48
  %v66 = vld [vmem:[%s2] sm:$0x1]
  %v68 = vperm.slane %v66, 0
  %v70 = vadd.f32 %v50, %v68
  %v71 = vadd.f32 %v51, %v68
  %v72 = vadd.f32 %v52, %v68
  %v73 = vadd.f32 %v53, %v68
  %v74 = vadd.f32 %v54, %v68
  %v75 = vadd.f32 %v55, %v68
  %v76 = vadd.f32 %v56, %v68
  %v77 = vadd.f32 %v57, %v68
  %v78 = vadd.f32 %v58, %v68
  %v79 = vadd.f32 %v59, %v68
  %v80 = vadd.f32 %v60, %v68
  %v81 = vadd.f32 %v61, %v68
  %v82 = vadd.f32 %v62, %v68
  %v83 = vadd.f32 %v63, %v68
  %v84 = vadd.f32 %v64, %v68
  %v85 = vadd.f32 %v65, %v68
  %v86 = vmax.f32 %v70, 0.0
  %v87 = vmax.f32 %v71, 0.0
  %v88 = vmax.f32 %v72, 0.0
  %v89 = vmax.f32 %v73, 0.0
  %v90 = vmax.f32 %v74, 0.0
  %v91 = vmax.f32 %v75, 0.0
  %v92 = vmax.f32 %v76, 0.0
  %v93 = vmax.f32 %v77, 0.0
  %v94 = vmax.f32 %v78, 0.0
  %v95 = vmax.f32 %v79, 0.0
  %v96 = vmax.f32 %v80, 0.0
  %v97 = vmax.f32 %v81, 0.0
  %v98 = vmax.f32 %v82, 0.0
  %v99 = vmax.f32 %v83, 0.0
  %v100 = vmax.f32 %v84, 0.0
  %v101 = vmax.f32 %v85, 0.0
  %v102 = vmin.f32 %v86, 1.0
  %v103 = vmin.f32 %v87, 1.0
  %v104 = vmin.f32 %v88, 1.0
  %v105 = vmin.f32 %v89, 1.0
  %v106 = vmin.f32 %v90, 1.0
  %v107 = vmin.f32 %v91, 1.0
  %v108 = vmin.f32 %v92, 1.0
  %v109 = vmin.f32 %v93, 1.0
  %v110 = vmin.f32 %v94, 1.0
  %v111 = vmin.f32 %v95, 1.0
  %v112 = vmin.f32 %v96, 1.0
  %v113 = vmin.f32 %v97, 1.0
  %v114 = vmin.f32 %v98, 1.0
  %v115 = vmin.f32 %v99, 1.0
  %v116 = vmin.f32 %v100, 1.0
  %v117 = vmin.f32 %v101, 1.0
  %v118 = vmul.f32 %v102, 255.0
  %v119 = vmul.f32 %v103, 255.0
  %v120 = vmul.f32 %v104, 255.0
  %v121 = vmul.f32 %v105, 255.0
  %v122 = vmul.f32 %v106, 255.0
  %v123 = vmul.f32 %v107, 255.0
  %v124 = vmul.f32 %v108, 255.0
  %v125 = vmul.f32 %v109, 255.0
  %v126 = vmul.f32 %v110, 255.0
  %v127 = vmul.f32 %v111, 255.0
  %v128 = vmul.f32 %v112, 255.0
  %v129 = vmul.f32 %v113, 255.0
  %v130 = vmul.f32 %v114, 255.0
  %v131 = vmul.f32 %v115, 255.0
  %v132 = vmul.f32 %v116, 255.0
  %v133 = vmul.f32 %v117, 255.0
  %v134 = vround.ne.pseudo %v118
  %v135 = vround.ne.pseudo %v119
  %v136 = vround.ne.pseudo %v120
  %v137 = vround.ne.pseudo %v121
  %v138 = vround.ne.pseudo %v122
  %v139 = vround.ne.pseudo %v123
  %v140 = vround.ne.pseudo %v124
  %v141 = vround.ne.pseudo %v125
  %v142 = vround.ne.pseudo %v126
  %v143 = vround.ne.pseudo %v127
  %v144 = vround.ne.pseudo %v128
  %v145 = vround.ne.pseudo %v129
  %v146 = vround.ne.pseudo %v130
  %v147 = vround.ne.pseudo %v131
  %v148 = vround.ne.pseudo %v132
  %v149 = vround.ne.pseudo %v133
  %v150 = vrcp.pop 255.0
  %v151 = vmul.f32 255.0, %v150
  %v152 = vsub.f32 1.0, %v151
  %v153 = vmul.f32 %v150, %v152
  %v154 = vadd.f32 %v150, %v153
  %vm155 = vweird.f32 %v150
  %v156 = vsel %vm155, %v150, %v154
  %v157 = vmul.f32 %v134, %v156
  %v158 = vmul.f32 %v135, %v156
  %v159 = vmul.f32 %v136, %v156
  %v160 = vmul.f32 %v137, %v156
  %v161 = vmul.f32 %v138, %v156
  %v162 = vmul.f32 %v139, %v156
  %v163 = vmul.f32 %v140, %v156
  %v164 = vmul.f32 %v141, %v156
  %v165 = vmul.f32 %v142, %v156
  %v166 = vmul.f32 %v143, %v156
  %v167 = vmul.f32 %v144, %v156
  %v168 = vmul.f32 %v145, %v156
  %v169 = vmul.f32 %v146, %v156
  %v170 = vmul.f32 %v147, %v156
  %v171 = vmul.f32 %v148, %v156
  %v172 = vmul.f32 %v149, %v156
  %v173 = vmax.f32 %v157, 0.0
  %v174 = vmax.f32 %v158, 0.0
  %v175 = vmax.f32 %v159, 0.0
  %v176 = vmax.f32 %v160, 0.0
  %v177 = vmax.f32 %v161, 0.0
  %v178 = vmax.f32 %v162, 0.0
  %v179 = vmax.f32 %v163, 0.0
  %v180 = vmax.f32 %v164, 0.0
  %v181 = vmax.f32 %v165, 0.0
  %v182 = vmax.f32 %v166, 0.0
  %v183 = vmax.f32 %v167, 0.0
  %v184 = vmax.f32 %v168, 0.0
  %v185 = vmax.f32 %v169, 0.0
  %v186 = vmax.f32 %v170, 0.0
  %v187 = vmax.f32 %v171, 0.0
  %v188 = vmax.f32 %v172, 0.0
  %v189 = vpack.c.bf16 %v173, %v173
  %v190 = vpack.c.bf16 %v174, %v174
  %v191 = vpack.c.bf16 %v175, %v175
  %v192 = vpack.c.bf16 %v176, %v176
  %v193 = vpack.c.bf16 %v177, %v177
  %v194 = vpack.c.bf16 %v178, %v178
  %v195 = vpack.c.bf16 %v179, %v179
  %v196 = vpack.c.bf16 %v180, %v180
  %v197 = vpack.c.bf16 %v181, %v181
  %v198 = vpack.c.bf16 %v182, %v182
  %v199 = vpack.c.bf16 %v183, %v183
  %v200 = vpack.c.bf16 %v184, %v184
  %v201 = vpack.c.bf16 %v185, %v185
  %v202 = vpack.c.bf16 %v186, %v186
  %v203 = vpack.c.bf16 %v187, %v187
  %v204 = vpack.c.bf16 %v188, %v188
  %205 = vst [vmem:[%s3] sm:$0xf] %v189
  %206 = vst [vmem:[%s3 + $0x4] sm:$0xf] %v190
  %207 = vst [vmem:[%s3 + $0x8] sm:$0xf] %v191
  %208 = vst [vmem:[%s3 + $0xc] sm:$0xf] %v192
  %209 = vst [vmem:[%s3 + $0x10] sm:$0xf] %v193
  %210 = vst [vmem:[%s3 + $0x14] sm:$0xf] %v194
  %211 = vst [vmem:[%s3 + $0x18] sm:$0xf] %v195
  %212 = vst [vmem:[%s3 + $0x1c] sm:$0xf] %v196
  %213 = vst [vmem:[%s3 + $0x20] sm:$0xf] %v197
  %214 = vst [vmem:[%s3 + $0x24] sm:$0xf] %v198
  %215 = vst [vmem:[%s3 + $0x28] sm:$0xf] %v199
  %216 = vst [vmem:[%s3 + $0x2c] sm:$0xf] %v200
  %217 = vst [vmem:[%s3 + $0x30] sm:$0xf] %v201
  %218 = vst [vmem:[%s3 + $0x34] sm:$0xf] %v202
  %219 = vst [vmem:[%s3 + $0x38] sm:$0xf] %v203
  %220 = vst [vmem:[%s3 + $0x3c] sm:$0xf] %v204
  // Predicated region
  $region14: #{preact_block_forward.7} parent=0 // pred_check
    _
  $region15: #{preact_block_forward.7} parent=0 // pred_check_branch
    %222 = sbr.rel (0) target = $region17
  $region16: #{preact_block_forward.7} parent=0 // pred_region
    _
  $region17: #{preact_block_forward.7} parent=0 // pred_fallthru
    _
  // Predicated region
  $region18: #{preact_block_forward.7} parent=0 // pred_check
    _
  $region19: #{preact_block_forward.7} parent=0 // pred_check_branch
    %224 = sbr.rel (0) target = $region21
  $region20: #{preact_block_forward.7} parent=0 // pred_region
    _
  $region21: #{preact_block_forward.7} parent=0 // pred_fallthru
    _

// kernel: preact_block_forward.5
$region0: #{preact_block_forward.5}
  #allocation0 [shape = 'u32[]', space=smem, size = 0x4, offset = 0x4, fixed_abs, tag = 'smem constant byte address 0x4 - core index']
  #allocation1 [shape = 'u32[72,128]{1,0:T(1,128)}', space=vmem, size = 0x9000, scoped, tag = 'internal scratch']
  %s0 = inlined_call_operand.vmem [shape: bf16[2,72,16], index: 0, kind: input, shape index: {}]
  %s1 = inlined_call_operand.vmem [shape: bf16[2,72,16], index: 1, kind: input, shape index: {}]
  %s2 = inlined_call_operand.vmem [shape: bf16[3,16,128], index: 2, kind: input, shape index: {}]
  %s3 = inlined_call_operand.vmem [shape: bf16[2,64,128], index: 3, kind: output, shape index: {0}]
  %s4 = inlined_call_operand.vmem [shape: f32[2,1,128], index: 4, kind: output, shape index: {1}]
  %s5 = inlined_call_operand.vmem [shape: f32[2,1,128], index: 5, kind: output, shape index: {2}]
  %6 = xla_tuple %s3, %s4, %s5
  %s7 = sld [smem:[#allocation0]]
  $region61: #{preact_block_forward.5} parent=0
    _
  %s9 = ssub.s32 1, %s7
  %s10 = scalar_select 0, %s9, %s7
  loop: start=0, step=1, limit=4
  $region2: #{preact_block_forward.5} parent=0 // loop_pre_header
    _
  $region3: #{preact_block_forward.5} parent=0 // loop_header
    %s12 = sphi 0, %s16
    %p13 = scmp.ge.s32.totalorder %s12, 4
    %s22 = sphi 0, %s24
    %s25 = sphi 0, %s22
    %s26 = sphi 0, %s25
    %s42 = sphi 0, %s26
    %s48 = sphi 0, %s50
    %s51 = sphi 0, %s48
    %s52 = sphi 0, %s51
    %s68 = sphi 0, %s52
    %s72 = sphi 0, %s72
    %s74 = sphi 0, %s72
    %s75 = sphi 0, %s74
    %s89 = sphi 0, %s75
    %s95 = sphi 0, %s97
    %s98 = sphi 0, %s95
    %s99 = sphi 0, %s98
    %s115 = sphi 0, %s99
    %s121 = sphi 0, %s123
    %s124 = sphi 0, %s121
    %s125 = sphi 0, %s124
    %s141 = sphi 0, %s125
    %s147 = sphi 0, %s149
    %s150 = sphi 0, %s147
    %s151 = sphi 0, %s150
    %s167 = sphi 0, %s151
  $region4: #{preact_block_forward.5} parent=0 // loop_header_branch
    %15 = sbr.rel (%p13) target = $region8
  $region5: #{preact_block_forward.5} parent=0 // loop_body
    %s17 = ssub.s32 %s12, 1
    %s18 = ssub.s32 %s12, 2
    %s19 = sadd.s32 %s12, 1
    %s20 = ssub.s32 %s12, %s19
    %p21 = scmp.eq.s32.totalorder %s20, 0
    %s23 = sadd.s32 %s22, 1
    %s24 = scalar_select %p21, %s22, %s23
    %p27 = pneg %p21
    %p28 = scmp.eq.s32.totalorder %s12, 1
    %p29 = por %p27, %p28
    %p30 = scmp.ne.s32.totalorder %s22, %s25
    %p31 = scmp.eq.s32.totalorder %s12, 0
    %p32 = por %p30, %p31
    %p33 = scmp.ne.s32.totalorder %s22, %s25
    %p34 = scmp.eq.s32.totalorder %s17, 1
    %p35 = por %p33, %p34
    %p36 = scmp.ne.s32.totalorder %s25, %s26
    %p37 = scmp.eq.s32.totalorder %s17, 0
    %p38 = por %p36, %p37
    %p39 = scmp.ne.s32.totalorder %s25, %s26
    %p40 = scmp.eq.s32.totalorder %s18, 1
    %p41 = por %p39, %p40
    %p43 = scmp.ne.s32.totalorder %s26, %s42
    %p44 = scmp.eq.s32.totalorder %s18, 0
    %p45 = por %p43, %p44
    %s46 = ssub.s32 %s12, %s19
    %p47 = scmp.eq.s32.totalorder %s46, 0
    %s49 = sadd.s32 %s48, 1
    %s50 = scalar_select %p47, %s48, %s49
    %p53 = pneg %p47
    %p54 = scmp.eq.s32.totalorder %s12, 1
    %p55 = por %p53, %p54
    %p56 = scmp.ne.s32.totalorder %s48, %s51
    %p57 = scmp.eq.s32.totalorder %s12, 0
    %p58 = por %p56, %p57
    %p59 = scmp.ne.s32.totalorder %s48, %s51
    %p60 = scmp.eq.s32.totalorder %s17, 1
    %p61 = por %p59, %p60
    %p62 = scmp.ne.s32.totalorder %s51, %s52
    %p63 = scmp.eq.s32.totalorder %s17, 0
    %p64 = por %p62, %p63
    %p65 = scmp.ne.s32.totalorder %s51, %s52
    %p66 = scmp.eq.s32.totalorder %s18, 1
    %p67 = por %p65, %p66
    %p69 = scmp.ne.s32.totalorder %s52, %s68
    %p70 = scmp.eq.s32.totalorder %s18, 0
    %p71 = por %p69, %p70
    %s73 = sadd.s32 %s72, 1
    %p76 = scmp.eq.s32.totalorder %s12, 1
    %p77 = scmp.ne.s32.totalorder %s72, %s74
    %p78 = scmp.eq.s32.totalorder %s12, 0
    %p79 = por %p77, %p78
    %p80 = scmp.ne.s32.totalorder %s72, %s74
    %p81 = scmp.eq.s32.totalorder %s17, 1
    %p82 = por %p80, %p81
    %p83 = scmp.ne.s32.totalorder %s74, %s75
    %p84 = scmp.eq.s32.totalorder %s17, 0
    %p85 = por %p83, %p84
    %p86 = scmp.ne.s32.totalorder %s74, %s75
    %p87 = scmp.eq.s32.totalorder %s18, 1
    %p88 = por %p86, %p87
    %p90 = scmp.ne.s32.totalorder %s75, %s89
    %p91 = scmp.eq.s32.totalorder %s18, 0
    %p92 = por %p90, %p91
    %s93 = ssub.s32 %s12, %s19
    %p94 = scmp.eq.s32.totalorder %s93, 0
    %s96 = sadd.s32 %s95, 1
    %s97 = scalar_select %p94, %s95, %s96
    %p100 = pneg %p94
    %p101 = scmp.eq.s32.totalorder %s12, 1
    %p102 = por %p100, %p101
    %p103 = scmp.ne.s32.totalorder %s95, %s98
    %p104 = scmp.eq.s32.totalorder %s12, 0
    %p105 = por %p103, %p104
    %p106 = scmp.ne.s32.totalorder %s95, %s98
    %p107 = scmp.eq.s32.totalorder %s17, 1
    %p108 = por %p106, %p107
    %p109 = scmp.ne.s32.totalorder %s98, %s99
    %p110 = scmp.eq.s32.totalorder %s17, 0
    %p111 = por %p109, %p110
    %p112 = scmp.ne.s32.totalorder %s98, %s99
    %p113 = scmp.eq.s32.totalorder %s18, 1
    %p114 = por %p112, %p113
    %p116 = scmp.ne.s32.totalorder %s99, %s115
    %p117 = scmp.eq.s32.totalorder %s18, 0
    %p118 = por %p116, %p117
    %s119 = ssub.s32 %s12, %s19
    %p120 = scmp.eq.s32.totalorder %s119, 0
    %s122 = sadd.s32 %s121, 1
    %s123 = scalar_select %p120, %s121, %s122
    %p126 = pneg %p120
    %p127 = scmp.eq.s32.totalorder %s12, 1
    %p128 = por %p126, %p127
    %p129 = scmp.ne.s32.totalorder %s121, %s124
    %p130 = scmp.eq.s32.totalorder %s12, 0
    %p131 = por %p129, %p130
    %p132 = scmp.ne.s32.totalorder %s121, %s124
    %p133 = scmp.eq.s32.totalorder %s17, 1
    %p134 = por %p132, %p133
    %p135 = scmp.ne.s32.totalorder %s124, %s125
    %p136 = scmp.eq.s32.totalorder %s17, 0
    %p137 = por %p135, %p136
    %p138 = scmp.ne.s32.totalorder %s124, %s125
    %p139 = scmp.eq.s32.totalorder %s18, 1
    %p140 = por %p138, %p139
    %p142 = scmp.ne.s32.totalorder %s125, %s141
    %p143 = scmp.eq.s32.totalorder %s18, 0
    %p144 = por %p142, %p143
    %s145 = ssub.s32 %s12, %s19
    %p146 = scmp.eq.s32.totalorder %s145, 0
    %s148 = sadd.s32 %s147, 1
    %s149 = scalar_select %p146, %s147, %s148
    %p152 = pneg %p146
    %p153 = scmp.eq.s32.totalorder %s12, 1
    %p154 = por %p152, %p153
    %p155 = scmp.ne.s32.totalorder %s147, %s150
    %p156 = scmp.eq.s32.totalorder %s12, 0
    %p157 = por %p155, %p156
    %p158 = scmp.ne.s32.totalorder %s147, %s150
    %p159 = scmp.eq.s32.totalorder %s17, 1
    %p160 = por %p158, %p159
    %p161 = scmp.ne.s32.totalorder %s150, %s151
    %p162 = scmp.eq.s32.totalorder %s17, 0
    %p163 = por %p161, %p162
    %p164 = scmp.ne.s32.totalorder %s150, %s151
    %p165 = scmp.eq.s32.totalorder %s18, 1
    %p166 = por %p164, %p165
    %p168 = scmp.ne.s32.totalorder %s151, %s167
    %p169 = scmp.eq.s32.totalorder %s18, 0
    %p170 = por %p168, %p169
    %p171 = scmp.le.s32.totalorder 1, %s12
    %p172 = scmp.lt.s32.totalorder %s12, 3
    %p173 = pnand %p171, %p172
    %p174 = pneg %p173
    // Predicated region
    $region9: #{preact_block_forward.5} parent=5 // pred_check
      _
    $region10: #{preact_block_forward.5} parent=5 // pred_check_branch
      %176 = sbr.rel (%p173) target = $region12
    $region11: #{preact_block_forward.5} parent=5 // pred_region
      %s177 = ssub.s32 %s12, 1
      // Predicated region
      $region13: #{preact_block_forward.5} parent=11 // pred_check
        %p178 = pneg %p85
      $region14: #{preact_block_forward.5} parent=11 // pred_check_branch
        %180 = sbr.rel (%p178) target = $region16
      $region15: #{preact_block_forward.5} parent=11 // pred_region
        _
      $region16: #{preact_block_forward.5} parent=11 // pred_fallthru
        _
    $region12: #{preact_block_forward.5} parent=5 // pred_fallthru
      _
    %p181 = scmp.lt.s32.totalorder %s12, 2
    // Predicated region
    $region17: #{preact_block_forward.5} parent=5 // pred_check
      %p182 = pneg %p181
    $region18: #{preact_block_forward.5} parent=5 // pred_check_branch
      %184 = sbr.rel (%p182) target = $region20
    $region19: #{preact_block_forward.5} parent=5 // pred_region
      // Predicated region
      $region21: #{preact_block_forward.5} parent=19 // pred_check
        %p185 = pneg %p32
      $region22: #{preact_block_forward.5} parent=19 // pred_check_branch
        %187 = sbr.rel (%p185) target = $region24
      $region23: #{preact_block_forward.5} parent=19 // pred_region
        %p188 = scmp.lt.s32.totalorder %s12, 1
        %s189 = scalar_select %p188, %s12, 1
        %s190 = smul.addr %s189, 9
        %s191 = smul.addr %s190, 4
        %s192 = scalar_lea.vmem %s0, %s191
      $region24: #{preact_block_forward.5} parent=19 // pred_fallthru
        _
      // Predicated region
      $region25: #{preact_block_forward.5} parent=19 // pred_check
        %p193 = pneg %p58
      $region26: #{preact_block_forward.5} parent=19 // pred_check_branch
        %195 = sbr.rel (%p193) target = $region28
      $region27: #{preact_block_forward.5} parent=19 // pred_region
        %p196 = scmp.lt.s32.totalorder %s12, 1
        %s197 = scalar_select %p196, %s12, 1
        %s198 = smul.addr %s197, 9
        %s199 = smul.addr %s198, 4
        %s200 = scalar_lea.vmem %s1, %s199
      $region28: #{preact_block_forward.5} parent=19 // pred_fallthru
        _
    $region20: #{preact_block_forward.5} parent=5 // pred_fallthru
      _
    %p201 = scmp.le.s32.totalorder 1, %s12
    %p202 = scmp.lt.s32.totalorder %s12, 3
    %p203 = pnand %p201, %p202
    %p204 = pneg %p203
    // Predicated region
    $region29: #{preact_block_forward.5} parent=5 // pred_check
      _
    $region30: #{preact_block_forward.5} parent=5 // pred_check_branch
      %206 = sbr.rel (%p203) target = $region32
    $region31: #{preact_block_forward.5} parent=5 // pred_region
      %s207 = ssub.s32 %s12, 1
      %p208 = scmp.lt.s32.totalorder %s17, 1
      %s209 = scalar_select %p208, %s17, 1
      %s210 = smul.addr %s209, 9
      %s211 = smul.addr %s210, 4
      %s212 = scalar_lea.vmem %s0, %s211
      %p213 = pneg %p38
      %p214 = pneg %p35
      %p215 = scmp.lt.s32.totalorder %s17, 1
      %s216 = scalar_select %p215, %s17, 1
      %s217 = smul.addr %s216, 9
      %s218 = smul.addr %s217, 4
      %s219 = scalar_lea.vmem %s1, %s218
      %p220 = pneg %p64
      %p221 = pneg %p61
      %p222 = pneg %p85
      %p223 = pneg %p82
      %p224 = pneg %p111
      %p225 = pneg %p108
      %p226 = scmp.lt.s32.totalorder %s17, 1
      %s227 = scalar_select %p226, %s17, 1
      %s228 = smul.addr %s227, 8
      %s229 = smul.addr %s228, 4
      %s230 = scalar_lea.vmem %s3, %s229
      %p231 = pneg %p137
      %p232 = pneg %p134
      %p233 = scmp.lt.s32.totalorder %s17, 1
      %s234 = scalar_select %p233, %s17, 1
      %s235 = scalar_lea.vmem %s4, %s234
      %p236 = pneg %p163
      %p237 = pneg %p160
      %p238 = scmp.lt.s32.totalorder %s17, 1
      %s239 = scalar_select %p238, %s17, 1
      %s240 = scalar_lea.vmem %s5, %s239
      %p241 = scmp.lt.s32.totalorder %s17, 1
      %s242 = scalar_select %p241, %s17, 1
      %s243 = smul.addr %s242, 9
      %s244 = smul.addr %s243, 4
      %s245 = scalar_lea.vmem %s0, %s244
      %p246 = scmp.lt.s32.totalorder %s17, 1
      %s247 = scalar_select %p246, %s17, 1
      %s248 = smul.addr %s247, 9
      %s249 = smul.addr %s248, 4
      %s250 = scalar_lea.vmem %s1, %s249
      %p251 = scmp.lt.s32.totalorder %s17, 1
      %s252 = scalar_select %p251, %s17, 1
      %s253 = smul.addr %s252, 8
      %s254 = smul.addr %s253, 4
      %s255 = scalar_lea.vmem %s3, %s254
      %p256 = scmp.lt.s32.totalorder %s17, 1
      %s257 = scalar_select %p256, %s17, 1
      %s258 = scalar_lea.vmem %s4, %s257
      %p259 = scmp.lt.s32.totalorder %s17, 1
      %s260 = scalar_select %p259, %s17, 1
      %s261 = scalar_lea.vmem %s5, %s260
      %v263 = vld [vmem:[%s245] sm:$0xf]
      %v264 = vld [vmem:[%s245 + $0x4] sm:$0xf]
      %v265 = vld [vmem:[%s245 + $0x8] sm:$0xf]
      %v266 = vld [vmem:[%s245 + $0xc] sm:$0xf]
      %v267 = vld [vmem:[%s245 + $0x10] sm:$0xf]
      %v268 = vld [vmem:[%s245 + $0x14] sm:$0xf]
      %v269 = vld [vmem:[%s245 + $0x18] sm:$0xf]
      %v270 = vld [vmem:[%s245 + $0x1c] sm:$0xf]
      %v271 = vld [vmem:[%s2] sm:$0xf]
      %v272 = vld [vmem:[%s2 + $0x4] sm:$0xf]
      %v273 = vld [vmem:[%s250] sm:$0xf]
      %v274 = vld [vmem:[%s250 + $0x4] sm:$0xf]
      %v275 = vld [vmem:[%s250 + $0x8] sm:$0xf]
      %v276 = vld [vmem:[%s250 + $0xc] sm:$0xf]
      %v277 = vld [vmem:[%s250 + $0x10] sm:$0xf]
      %v278 = vld [vmem:[%s250 + $0x14] sm:$0xf]
      %v279 = vld [vmem:[%s250 + $0x18] sm:$0xf]
      %v280 = vld [vmem:[%s250 + $0x1c] sm:$0xf]
      %s281 = scalar_lea.vmem %s2, 8
      %v282 = vld [vmem:[%s281] sm:$0xf]
      %v283 = vld [vmem:[%s281 + $0x4] sm:$0xf]
      %v292 = vunpack.c.l.b16 %v273
      %v293 = vunpack.c.l.b16 %v274
      %v294 = vunpack.c.l.b16 %v275
      %v295 = vunpack.c.l.b16 %v276
      %v296 = vunpack.c.l.b16 %v277
      %v297 = vunpack.c.l.b16 %v278
      %v298 = vunpack.c.l.b16 %v279
      %v299 = vunpack.c.l.b16 %v280
      %v300 = vpack.c.b16 %v293, %v292
      %v301 = vpack.c.b16 %v295, %v294
      %v302 = vpack.c.b16 %v297, %v296
      %v303 = vpack.c.b16 %v299, %v298
      %v306 = vunpack.c.l.b16 %v282
      %v307 = vunpack.c.l.b16 %v283
      %v308 = vpack.c.b16 %v307, %v306
      %vm310 = vcmask 130048
      %v312 = vsel %vm310, %v300, 0
      %v315 = vsel %vm310, %v301, 0
      %v318 = vsel %vm310, %v302, 0
      %v321 = vsel %vm310, %v303, 0
      %323 = vmatpush.bf16.msra.mxu0 0
      %324 = vmatpush.bf16.msra.mxu0 0
      %325 = vmatpush.bf16.msra.mxu0 0
      %326 = vmatpush.bf16.msra.mxu0 0
      %327 = vmatpush.bf16.msra.mxu0 0
      %328 = vmatpush.bf16.msra.mxu0 0
      %329 = vmatpush.bf16.msra.mxu0 0
      %330 = vmatpush.bf16.msra.mxu0 %v308
      %331 = vmatmul.bf16.gmra.mxu0 %v312
      %v332 = vpop.f32.mrf.mxu0
      %v333 = vadd.f32 0.0, %v332
      %v334 = vpop.f32.mrf.mxu0
      %v335 = vadd.f32 0.0, %v334
      %336 = vmatmul.bf16.gmra.mxu0 %v315
      %v337 = vpop.f32.mrf.mxu0
      %v338 = vadd.f32 0.0, %v337
      %v339 = vpop.f32.mrf.mxu0
      %v340 = vadd.f32 0.0, %v339
      %341 = vmatmul.bf16.gmra.mxu0 %v318
      %v342 = vpop.f32.mrf.mxu0
      %v343 = vadd.f32 0.0, %v342
      %v344 = vpop.f32.mrf.mxu0
      %v345 = vadd.f32 0.0, %v344
      %346 = vmatmul.bf16.gmra.mxu0 %v321
      %v347 = vpop.f32.mrf.mxu0
      %v348 = vadd.f32 0.0, %v347
      %v349 = vpop.f32.mrf.mxu0
      %v350 = vadd.f32 0.0, %v349
      %351 = vdwg.mxu0
      %v360 = vunpack.c.l.b16 %v263
      %v361 = vunpack.c.l.b16 %v264
      %v362 = vunpack.c.l.b16 %v265
      %v363 = vunpack.c.l.b16 %v266
      %v364 = vunpack.c.l.b16 %v267
      %v365 = vunpack.c.l.b16 %v268
      %v366 = vunpack.c.l.b16 %v269
      %v367 = vunpack.c.l.b16 %v270
      %v368 = vpack.c.b16 %v361, %v360
      %v369 = vpack.c.b16 %v363, %v362
      %v370 = vpack.c.b16 %v365, %v364
      %v371 = vpack.c.b16 %v367, %v366
      %v374 = vunpack.c.l.b16 %v271
      %v375 = vunpack.c.l.b16 %v272
      %v376 = vpack.c.b16 %v375, %v374
      %v379 = vsel %vm310, %v368, 0
      %v382 = vsel %vm310, %v369, 0
      %v385 = vsel %vm310, %v370, 0
      %v388 = vsel %vm310, %v371, 0
      %390 = vmatpush.bf16.msra.mxu0 0
      %391 = vmatpush.bf16.msra.mxu0 0
      %392 = vmatpush.bf16.msra.mxu0 0
      %393 = vmatpush.bf16.msra.mxu0 0
      %394 = vmatpush.bf16.msra.mxu0 0
      %395 = vmatpush.bf16.msra.mxu0 0
      %396 = vmatpush.bf16.msra.mxu0 0
      %397 = vmatpush.bf16.msra.mxu0 %v376
      %398 = vmatmul.bf16.gmra.mxu0 %v379
      %v399 = vpop.f32.mrf.mxu0
      %v400 = vadd.f32 %v333, %v399
      %v401 = vpop.f32.mrf.mxu0
      %v402 = vadd.f32 %v335, %v401
      %403 = vmatmul.bf16.gmra.mxu0 %v382
      %v404 = vpop.f32.mrf.mxu0
      %v405 = vadd.f32 %v338, %v404
      %v406 = vpop.f32.mrf.mxu0
      %v407 = vadd.f32 %v340, %v406
      %408 = vmatmul.bf16.gmra.mxu0 %v385
      %v409 = vpop.f32.mrf.mxu0
      %v410 = vadd.f32 %v343, %v409
      %v411 = vpop.f32.mrf.mxu0
      %v412 = vadd.f32 %v345, %v411
      %413 = vmatmul.bf16.gmra.mxu0 %v388
      %v414 = vpop.f32.mrf.mxu0
      %v415 = vadd.f32 %v348, %v414
      %v416 = vpop.f32.mrf.mxu0
      %v417 = vadd.f32 %v350, %v416
      %418 = vdwg.mxu0
      %v419 = vld [vmem:[%s245 + $0x4] sm:$0xf]
      %v420 = vld [vmem:[%s245 + $0x8] sm:$0xf]
      %v421 = vld [vmem:[%s245 + $0xc] sm:$0xf]
      %v422 = vld [vmem:[%s245 + $0x10] sm:$0xf]
      %v423 = vld [vmem:[%s245 + $0x14] sm:$0xf]
      %v424 = vld [vmem:[%s245 + $0x18] sm:$0xf]
      %v425 = vld [vmem:[%s245 + $0x1c] sm:$0xf]
      %v426 = vld [vmem:[%s245 + $0x20] sm:$0xf]
      %s427 = scalar_lea.vmem %s2, 16
      %v428 = vld [vmem:[%s427] sm:$0xf]
      %v429 = vld [vmem:[%s427 + $0x4] sm:$0xf]
      %v438 = vunpack.c.l.b16 %v419
      %v439 = vunpack.c.l.b16 %v420
      %v440 = vunpack.c.l.b16 %v421
      %v441 = vunpack.c.l.b16 %v422
      %v442 = vunpack.c.l.b16 %v423
      %v443 = vunpack.c.l.b16 %v424
      %v444 = vunpack.c.l.b16 %v425
      %v445 = vunpack.c.l.b16 %v426
      %v446 = vpack.c.b16 %v439, %v438
      %v447 = vpack.c.b16 %v441, %v440
      %v448 = vpack.c.b16 %v443, %v442
      %v449 = vpack.c.b16 %v445, %v444
      %v452 = vunpack.c.l.b16 %v428
      %v453 = vunpack.c.l.b16 %v429
      %v454 = vpack.c.b16 %v453, %v452
      %v457 = vsel %vm310, %v446, 0
      %v460 = vsel %vm310, %v447, 0
      %v463 = vsel %vm310, %v448, 0
      %v466 = vsel %vm310, %v449, 0
      %468 = vmatpush.bf16.msra.mxu0 0
      %469 = vmatpush.bf16.msra.mxu0 0
      %470 = vmatpush.bf16.msra.mxu0 0
      %471 = vmatpush.bf16.msra.mxu0 0
      %472 = vmatpush.bf16.msra.mxu0 0
      %473 = vmatpush.bf16.msra.mxu0 0
      %474 = vmatpush.bf16.msra.mxu0 0
      %475 = vmatpush.bf16.msra.mxu0 %v454
      %476 = vmatmul.bf16.gmra.mxu0 %v457
      %v477 = vpop.f32.mrf.mxu0
      %v478 = vadd.f32 0.0, %v477
      %v479 = vpop.f32.mrf.mxu0
      %v480 = vadd.f32 0.0, %v479
      %481 = vmatmul.bf16.gmra.mxu0 %v460
      %v482 = vpop.f32.mrf.mxu0
      %v483 = vadd.f32 0.0, %v482
      %v484 = vpop.f32.mrf.mxu0
      %v485 = vadd.f32 0.0, %v484
      %486 = vmatmul.bf16.gmra.mxu0 %v463
      %v487 = vpop.f32.mrf.mxu0
      %v488 = vadd.f32 0.0, %v487
      %v489 = vpop.f32.mrf.mxu0
      %v490 = vadd.f32 0.0, %v489
      %491 = vmatmul.bf16.gmra.mxu0 %v466
      %v492 = vpop.f32.mrf.mxu0
      %v493 = vadd.f32 0.0, %v492
      %v494 = vpop.f32.mrf.mxu0
      %v495 = vadd.f32 0.0, %v494
      %496 = vdwg.mxu0
      %v497 = vadd.f32 %v400, %v478
      %v498 = vadd.f32 %v402, %v480
      %v499 = vadd.f32 %v405, %v483
      %v500 = vadd.f32 %v407, %v485
      %v501 = vadd.f32 %v410, %v488
      %v502 = vadd.f32 %v412, %v490
      %v503 = vadd.f32 %v415, %v493
      %v504 = vadd.f32 %v417, %v495
      %v505 = vpack.c.bf16 %v497, %v497
      %v506 = vpack.c.bf16 %v498, %v498
      %v507 = vpack.c.bf16 %v499, %v499
      %v508 = vpack.c.bf16 %v500, %v500
      %v509 = vpack.c.bf16 %v501, %v501
      %v510 = vpack.c.bf16 %v502, %v502
      %v511 = vpack.c.bf16 %v503, %v503
      %v512 = vpack.c.bf16 %v504, %v504
      %513 = vst [vmem:[%s255] sm:$0xf] %v505
      %514 = vst [vmem:[%s255 + $0x4] sm:$0xf] %v506
      %515 = vst [vmem:[%s255 + $0x8] sm:$0xf] %v507
      %516 = vst [vmem:[%s255 + $0xc] sm:$0xf] %v508
      %517 = vst [vmem:[%s255 + $0x10] sm:$0xf] %v509
      %518 = vst [vmem:[%s255 + $0x14] sm:$0xf] %v510
      %519 = vst [vmem:[%s255 + $0x18] sm:$0xf] %v511
      %520 = vst [vmem:[%s255 + $0x1c] sm:$0xf] %v512
      %v521 = vadd.f32 %v497, %v498
      %v522 = vadd.f32 %v521, %v499
      %v523 = vadd.f32 %v522, %v500
      %v524 = vadd.f32 %v523, %v501
      %v525 = vadd.f32 %v524, %v502
      %v526 = vadd.f32 %v525, %v503
      %v527 = vadd.f32 %v526, %v504
      %v528 = vrot.slane %v527, 4
      %v529 = vadd.f32 %v527, %v528
      %v530 = vrot.slane %v529, 2
      %v531 = vadd.f32 %v529, %v530
      %v532 = vrot.slane %v531, 1
      %v533 = vadd.f32 %v531, %v532
      %534 = vst [vmem:[%s258] sm:$0x1] %v533
      %v535 = vmul.f32 %v497, %v497
      %v536 = vmul.f32 %v498, %v498
      %v537 = vmul.f32 %v499, %v499
      %v538 = vmul.f32 %v500, %v500
      %v539 = vmul.f32 %v501, %v501
      %v540 = vmul.f32 %v502, %v502
      %v541 = vmul.f32 %v503, %v503
      %v542 = vmul.f32 %v504, %v504
      %v543 = vadd.f32 %v535, %v536
      %v544 = vadd.f32 %v543, %v537
      %v545 = vadd.f32 %v544, %v538
      %v546 = vadd.f32 %v545, %v539
      %v547 = vadd.f32 %v546, %v540
      %v548 = vadd.f32 %v547, %v541
      %v549 = vadd.f32 %v548, %v542
      %v550 = vrot.slane %v549, 4
      %v551 = vadd.f32 %v549, %v550
      %v552 = vrot.slane %v551, 2
      %v553 = vadd.f32 %v551, %v552
      %v554 = vrot.slane %v553, 1
      %v555 = vadd.f32 %v553, %v554
      %556 = vst [vmem:[%s261] sm:$0x1] %v555
      %p557 = scmp.lt.s32.totalorder %s17, 1
      %s558 = scalar_select %p557, %s17, 1
      %s559 = smul.addr %s558, 8
      %s560 = smul.addr %s559, 4
      %s561 = scalar_lea.vmem %s3, %s560
      %p562 = scmp.lt.s32.totalorder %s17, 1
      %s563 = scalar_select %p562, %s17, 1
      %s564 = scalar_lea.vmem %s4, %s563
      %p565 = scmp.lt.s32.totalorder %s17, 1
      %s566 = scalar_select %p565, %s17, 1
      %s567 = scalar_lea.vmem %s5, %s566
      // Predicated region
      $region33: #{preact_block_forward.5} parent=31 // pred_check
        %p568 = pneg %p108
      $region34: #{preact_block_forward.5} parent=31 // pred_check_branch
        %570 = sbr.rel (%p568) target = $region36
      $region35: #{preact_block_forward.5} parent=31 // pred_region
        _
      $region36: #{preact_block_forward.5} parent=31 // pred_fallthru
        _
      // Predicated region
      $region37: #{preact_block_forward.5} parent=31 // pred_check
        %p571 = pneg %p134
      $region38: #{preact_block_forward.5} parent=31 // pred_check_branch
        %573 = sbr.rel (%p571) target = $region40
      $region39: #{preact_block_forward.5} parent=31 // pred_region
        _
      $region40: #{preact_block_forward.5} parent=31 // pred_fallthru
        _
      // Predicated region
      $region41: #{preact_block_forward.5} parent=31 // pred_check
        %p574 = pneg %p160
      $region42: #{preact_block_forward.5} parent=31 // pred_check_branch
        %576 = sbr.rel (%p574) target = $region44
      $region43: #{preact_block_forward.5} parent=31 // pred_region
        _
      $region44: #{preact_block_forward.5} parent=31 // pred_fallthru
        _
    $region32: #{preact_block_forward.5} parent=5 // pred_fallthru
      _
    %p577 = scmp.le.s32.totalorder 2, %s12
    // Predicated region
    $region45: #{preact_block_forward.5} parent=5 // pred_check
      %p578 = pneg %p577
    $region46: #{preact_block_forward.5} parent=5 // pred_check_branch
      %580 = sbr.rel (%p578) target = $region48
    $region47: #{preact_block_forward.5} parent=5 // pred_region
      %s581 = ssub.s32 %s12, 2
      // Predicated region
      $region49: #{preact_block_forward.5} parent=47 // pred_check
        %p582 = pneg %p114
      $region50: #{preact_block_forward.5} parent=47 // pred_check_branch
        %584 = sbr.rel (%p582) target = $region52
      $region51: #{preact_block_forward.5} parent=47 // pred_region
        %p585 = scmp.lt.s32.totalorder %s18, 1
        %s586 = scalar_select %p585, %s18, 1
        %s587 = smul.addr %s586, 8
        %s588 = smul.addr %s587, 4
        %s589 = scalar_lea.vmem %s3, %s588
      $region52: #{preact_block_forward.5} parent=47 // pred_fallthru
        _
      // Predicated region
      $region53: #{preact_block_forward.5} parent=47 // pred_check
        %p590 = pneg %p140
      $region54: #{preact_block_forward.5} parent=47 // pred_check_branch
        %592 = sbr.rel (%p590) target = $region56
      $region55: #{preact_block_forward.5} parent=47 // pred_region
        %p593 = scmp.lt.s32.totalorder %s18, 1
        %s594 = scalar_select %p593, %s18, 1
        %s595 = scalar_lea.vmem %s4, %s594
      $region56: #{preact_block_forward.5} parent=47 // pred_fallthru
        _
      // Predicated region
      $region57: #{preact_block_forward.5} parent=47 // pred_check
        %p596 = pneg %p166
      $region58: #{preact_block_forward.5} parent=47 // pred_check_branch
        %598 = sbr.rel (%p596) target = $region60
      $region59: #{preact_block_forward.5} parent=47 // pred_region
        %p599 = scmp.lt.s32.totalorder %s18, 1
        %s600 = scalar_select %p599, %s18, 1
        %s601 = scalar_lea.vmem %s5, %s600
      $region60: #{preact_block_forward.5} parent=47 // pred_fallthru
        _
    $region48: #{preact_block_forward.5} parent=5 // pred_fallthru
      _
  $region6: #{preact_block_forward.5} parent=0 // loop_footer
    %s16 = sadd.s32 1, %s12
  $region7: #{preact_block_forward.5} parent=0 // loop_footer_branch
    %11 = sbr.rel target = $region3
  $region8: #{preact_block_forward.5} parent=0 // loop_exit
    _

// kernel: preact_block_forward.8
$region0: #{preact_block_forward.8}
  #allocation0 [shape = 'u32[]', space=smem, size = 0x4, offset = 0x4, fixed_abs, tag = 'smem constant byte address 0x4 - core index']
  #allocation1 [shape = 'u32[72,128]{1,0:T(1,128)}', space=vmem, size = 0x9000, scoped, tag = 'internal scratch']
  %s0 = inlined_call_operand.vmem [shape: bf16[2,80,24], index: 0, kind: input, shape index: {}]
  %s1 = inlined_call_operand.vmem [shape: bf16[3,24,128], index: 1, kind: input, shape index: {}]
  %s2 = inlined_call_operand.vmem [shape: bf16[2,64,128], index: 2, kind: output, shape index: {0}]
  %s3 = inlined_call_operand.vmem [shape: f32[2,1,128], index: 3, kind: output, shape index: {1}]
  %s4 = inlined_call_operand.vmem [shape: f32[2,1,128], index: 4, kind: output, shape index: {2}]
  %5 = xla_tuple %s2, %s3, %s4
  %s6 = sld [smem:[#allocation0]]
  $region57: #{preact_block_forward.8} parent=0
    _
  %s8 = ssub.s32 1, %s6
  %s9 = scalar_select 0, %s8, %s6
  loop: start=0, step=1, limit=4
  $region2: #{preact_block_forward.8} parent=0 // loop_pre_header
    _
  $region3: #{preact_block_forward.8} parent=0 // loop_header
    %s11 = sphi 0, %s15
    %p12 = scmp.ge.s32.totalorder %s11, 4
    %s21 = sphi 0, %s23
    %s24 = sphi 0, %s21
    %s25 = sphi 0, %s24
    %s41 = sphi 0, %s25
    %s45 = sphi 0, %s45
    %s47 = sphi 0, %s45
    %s48 = sphi 0, %s47
    %s62 = sphi 0, %s48
    %s68 = sphi 0, %s70
    %s71 = sphi 0, %s68
    %s72 = sphi 0, %s71
    %s88 = sphi 0, %s72
    %s94 = sphi 0, %s96
    %s97 = sphi 0, %s94
    %s98 = sphi 0, %s97
    %s114 = sphi 0, %s98
    %s120 = sphi 0, %s122
    %s123 = sphi 0, %s120
    %s124 = sphi 0, %s123
    %s140 = sphi 0, %s124
  $region4: #{preact_block_forward.8} parent=0 // loop_header_branch
    %14 = sbr.rel (%p12) target = $region8
  $region5: #{preact_block_forward.8} parent=0 // loop_body
    %s16 = ssub.s32 %s11, 1
    %s17 = ssub.s32 %s11, 2
    %s18 = sadd.s32 %s11, 1
    %s19 = ssub.s32 %s11, %s18
    %p20 = scmp.eq.s32.totalorder %s19, 0
    %s22 = sadd.s32 %s21, 1
    %s23 = scalar_select %p20, %s21, %s22
    %p26 = pneg %p20
    %p27 = scmp.eq.s32.totalorder %s11, 1
    %p28 = por %p26, %p27
    %p29 = scmp.ne.s32.totalorder %s21, %s24
    %p30 = scmp.eq.s32.totalorder %s11, 0
    %p31 = por %p29, %p30
    %p32 = scmp.ne.s32.totalorder %s21, %s24
    %p33 = scmp.eq.s32.totalorder %s16, 1
    %p34 = por %p32, %p33
    %p35 = scmp.ne.s32.totalorder %s24, %s25
    %p36 = scmp.eq.s32.totalorder %s16, 0
    %p37 = por %p35, %p36
    %p38 = scmp.ne.s32.totalorder %s24, %s25
    %p39 = scmp.eq.s32.totalorder %s17, 1
    %p40 = por %p38, %p39
    %p42 = scmp.ne.s32.totalorder %s25, %s41
    %p43 = scmp.eq.s32.totalorder %s17, 0
    %p44 = por %p42, %p43
    %s46 = sadd.s32 %s45, 1
    %p49 = scmp.eq.s32.totalorder %s11, 1
    %p50 = scmp.ne.s32.totalorder %s45, %s47
    %p51 = scmp.eq.s32.totalorder %s11, 0
    %p52 = por %p50, %p51
    %p53 = scmp.ne.s32.totalorder %s45, %s47
    %p54 = scmp.eq.s32.totalorder %s16, 1
    %p55 = por %p53, %p54
    %p56 = scmp.ne.s32.totalorder %s47, %s48
    %p57 = scmp.eq.s32.totalorder %s16, 0
    %p58 = por %p56, %p57
    %p59 = scmp.ne.s32.totalorder %s47, %s48
    %p60 = scmp.eq.s32.totalorder %s17, 1
    %p61 = por %p59, %p60
    %p63 = scmp.ne.s32.totalorder %s48, %s62
    %p64 = scmp.eq.s32.totalorder %s17, 0
    %p65 = por %p63, %p64
    %s66 = ssub.s32 %s11, %s18
    %p67 = scmp.eq.s32.totalorder %s66, 0
    %s69 = sadd.s32 %s68, 1
    %s70 = scalar_select %p67, %s68, %s69
    %p73 = pneg %p67
    %p74 = scmp.eq.s32.totalorder %s11, 1
    %p75 = por %p73, %p74
    %p76 = scmp.ne.s32.totalorder %s68, %s71
    %p77 = scmp.eq.s32.totalorder %s11, 0
    %p78 = por %p76, %p77
    %p79 = scmp.ne.s32.totalorder %s68, %s71
    %p80 = scmp.eq.s32.totalorder %s16, 1
    %p81 = por %p79, %p80
    %p82 = scmp.ne.s32.totalorder %s71, %s72
    %p83 = scmp.eq.s32.totalorder %s16, 0
    %p84 = por %p82, %p83
    %p85 = scmp.ne.s32.totalorder %s71, %s72
    %p86 = scmp.eq.s32.totalorder %s17, 1
    %p87 = por %p85, %p86
    %p89 = scmp.ne.s32.totalorder %s72, %s88
    %p90 = scmp.eq.s32.totalorder %s17, 0
    %p91 = por %p89, %p90
    %s92 = ssub.s32 %s11, %s18
    %p93 = scmp.eq.s32.totalorder %s92, 0
    %s95 = sadd.s32 %s94, 1
    %s96 = scalar_select %p93, %s94, %s95
    %p99 = pneg %p93
    %p100 = scmp.eq.s32.totalorder %s11, 1
    %p101 = por %p99, %p100
    %p102 = scmp.ne.s32.totalorder %s94, %s97
    %p103 = scmp.eq.s32.totalorder %s11, 0
    %p104 = por %p102, %p103
    %p105 = scmp.ne.s32.totalorder %s94, %s97
    %p106 = scmp.eq.s32.totalorder %s16, 1
    %p107 = por %p105, %p106
    %p108 = scmp.ne.s32.totalorder %s97, %s98
    %p109 = scmp.eq.s32.totalorder %s16, 0
    %p110 = por %p108, %p109
    %p111 = scmp.ne.s32.totalorder %s97, %s98
    %p112 = scmp.eq.s32.totalorder %s17, 1
    %p113 = por %p111, %p112
    %p115 = scmp.ne.s32.totalorder %s98, %s114
    %p116 = scmp.eq.s32.totalorder %s17, 0
    %p117 = por %p115, %p116
    %s118 = ssub.s32 %s11, %s18
    %p119 = scmp.eq.s32.totalorder %s118, 0
    %s121 = sadd.s32 %s120, 1
    %s122 = scalar_select %p119, %s120, %s121
    %p125 = pneg %p119
    %p126 = scmp.eq.s32.totalorder %s11, 1
    %p127 = por %p125, %p126
    %p128 = scmp.ne.s32.totalorder %s120, %s123
    %p129 = scmp.eq.s32.totalorder %s11, 0
    %p130 = por %p128, %p129
    %p131 = scmp.ne.s32.totalorder %s120, %s123
    %p132 = scmp.eq.s32.totalorder %s16, 1
    %p133 = por %p131, %p132
    %p134 = scmp.ne.s32.totalorder %s123, %s124
    %p135 = scmp.eq.s32.totalorder %s16, 0
    %p136 = por %p134, %p135
    %p137 = scmp.ne.s32.totalorder %s123, %s124
    %p138 = scmp.eq.s32.totalorder %s17, 1
    %p139 = por %p137, %p138
    %p141 = scmp.ne.s32.totalorder %s124, %s140
    %p142 = scmp.eq.s32.totalorder %s17, 0
    %p143 = por %p141, %p142
    %p144 = scmp.le.s32.totalorder 1, %s11
    %p145 = scmp.lt.s32.totalorder %s11, 3
    %p146 = pnand %p144, %p145
    %p147 = pneg %p146
    // Predicated region
    $region9: #{preact_block_forward.8} parent=5 // pred_check
      _
    $region10: #{preact_block_forward.8} parent=5 // pred_check_branch
      %149 = sbr.rel (%p146) target = $region12
    $region11: #{preact_block_forward.8} parent=5 // pred_region
      %s150 = ssub.s32 %s11, 1
      // Predicated region
      $region13: #{preact_block_forward.8} parent=11 // pred_check
        %p151 = pneg %p58
      $region14: #{preact_block_forward.8} parent=11 // pred_check_branch
        %153 = sbr.rel (%p151) target = $region16
      $region15: #{preact_block_forward.8} parent=11 // pred_region
        _
      $region16: #{preact_block_forward.8} parent=11 // pred_fallthru
        _
    $region12: #{preact_block_forward.8} parent=5 // pred_fallthru
      _
    %p154 = scmp.lt.s32.totalorder %s11, 2
    // Predicated region
    $region17: #{preact_block_forward.8} parent=5 // pred_check
      %p155 = pneg %p154
    $region18: #{preact_block_forward.8} parent=5 // pred_check_branch
      %157 = sbr.rel (%p155) target = $region20
    $region19: #{preact_block_forward.8} parent=5 // pred_region
      // Predicated region
      $region21: #{preact_block_forward.8} parent=19 // pred_check
        %p158 = pneg %p31
      $region22: #{preact_block_forward.8} parent=19 // pred_check_branch
        %160 = sbr.rel (%p158) target = $region24
      $region23: #{preact_block_forward.8} parent=19 // pred_region
        %p161 = scmp.lt.s32.totalorder %s11, 1
        %s162 = scalar_select %p161, %s11, 1
        %s163 = smul.addr %s162, 10
        %s164 = smul.addr %s163, 4
        %s165 = scalar_lea.vmem %s0, %s164
      $region24: #{preact_block_forward.8} parent=19 // pred_fallthru
        _
    $region20: #{preact_block_forward.8} parent=5 // pred_fallthru
      _
    %p166 = scmp.le.s32.totalorder 1, %s11
    %p167 = scmp.lt.s32.totalorder %s11, 3
    %p168 = pnand %p166, %p167
    %p169 = pneg %p168
    // Predicated region
    $region25: #{preact_block_forward.8} parent=5 // pred_check
      _
    $region26: #{preact_block_forward.8} parent=5 // pred_check_branch
      %171 = sbr.rel (%p168) target = $region28
    $region27: #{preact_block_forward.8} parent=5 // pred_region
      %s172 = ssub.s32 %s11, 1
      %p173 = scmp.lt.s32.totalorder %s16, 1
      %s174 = scalar_select %p173, %s16, 1
      %s175 = smul.addr %s174, 10
      %s176 = smul.addr %s175, 4
      %s177 = scalar_lea.vmem %s0, %s176
      %p178 = pneg %p37
      %p179 = pneg %p34
      %p180 = pneg %p58
      %p181 = pneg %p55
      %p182 = pneg %p84
      %p183 = pneg %p81
      %p184 = scmp.lt.s32.totalorder %s16, 1
      %s185 = scalar_select %p184, %s16, 1
      %s186 = smul.addr %s185, 8
      %s187 = smul.addr %s186, 4
      %s188 = scalar_lea.vmem %s2, %s187
      %p189 = pneg %p110
      %p190 = pneg %p107
      %p191 = scmp.lt.s32.totalorder %s16, 1
      %s192 = scalar_select %p191, %s16, 1
      %s193 = scalar_lea.vmem %s3, %s192
      %p194 = pneg %p136
      %p195 = pneg %p133
      %p196 = scmp.lt.s32.totalorder %s16, 1
      %s197 = scalar_select %p196, %s16, 1
      %s198 = scalar_lea.vmem %s4, %s197
      %p199 = scmp.lt.s32.totalorder %s16, 1
      %s200 = scalar_select %p199, %s16, 1
      %s201 = smul.addr %s200, 10
      %s202 = smul.addr %s201, 4
      %s203 = scalar_lea.vmem %s0, %s202
      %p204 = scmp.lt.s32.totalorder %s16, 1
      %s205 = scalar_select %p204, %s16, 1
      %s206 = smul.addr %s205, 8
      %s207 = smul.addr %s206, 4
      %s208 = scalar_lea.vmem %s2, %s207
      %p209 = scmp.lt.s32.totalorder %s16, 1
      %s210 = scalar_select %p209, %s16, 1
      %s211 = scalar_lea.vmem %s3, %s210
      %p212 = scmp.lt.s32.totalorder %s16, 1
      %s213 = scalar_select %p212, %s16, 1
      %s214 = scalar_lea.vmem %s4, %s213
      %v216 = vld [vmem:[%s203] sm:$0xf]
      %v217 = vld [vmem:[%s203 + $0x4] sm:$0xf]
      %v218 = vld [vmem:[%s203 + $0x8] sm:$0xf]
      %v219 = vld [vmem:[%s203 + $0xc] sm:$0xf]
      %v220 = vld [vmem:[%s203 + $0x10] sm:$0xf]
      %v221 = vld [vmem:[%s203 + $0x14] sm:$0xf]
      %v222 = vld [vmem:[%s203 + $0x18] sm:$0xf]
      %v223 = vld [vmem:[%s203 + $0x1c] sm:$0xf]
      %v224 = vld [vmem:[%s1] sm:$0xf]
      %v225 = vld [vmem:[%s1 + $0x4] sm:$0xf]
      %v226 = vld [vmem:[%s1 + $0x8] sm:$0xf]
      %v227 = vld [vmem:[%s203 + $0x20] sm:$0xf]
      %s228 = scalar_lea.vmem %s1, 12
      %v229 = vld [vmem:[%s228] sm:$0xf]
      %v230 = vld [vmem:[%s228 + $0x4] sm:$0xf]
      %v231 = vld [vmem:[%s228 + $0x8] sm:$0xf]
      %v240 = vunpack.c.l.b16 %v217
      %v241 = vunpack.c.l.b16 %v218
      %v242 = vunpack.c.l.b16 %v219
      %v243 = vunpack.c.l.b16 %v220
      %v244 = vunpack.c.l.b16 %v221
      %v245 = vunpack.c.l.b16 %v222
      %v246 = vunpack.c.l.b16 %v223
      %v247 = vunpack.c.l.b16 %v227
      %v248 = vpack.c.b16 %v241, %v240
      %v249 = vpack.c.b16 %v243, %v242
      %v250 = vpack.c.b16 %v245, %v244
      %v251 = vpack.c.b16 %v247, %v246
      %v255 = vunpack.c.l.b16 %v229
      %v256 = vunpack.c.l.b16 %v230
      %v257 = vunpack.c.l.b16 %v231
      %v258 = vpack.c.b16 %v256, %v255
      %v259 = vpack.c.b16 %v257, %v257
      %vm261 = vcmask 195584
      %v263 = vsel %vm261, %v248, 0
      %v266 = vsel %vm261, %v249, 0
      %v269 = vsel %vm261, %v250, 0
      %v272 = vsel %vm261, %v251, 0
      %vm274 = vcmask 1043456
      %v276 = vsel %vm274, %v259, 0
      %278 = vmatpush.bf16.msra.mxu0 0
      %279 = vmatpush.bf16.msra.mxu0 0
      %280 = vmatpush.bf16.msra.mxu0 0
      %281 = vmatpush.bf16.msra.mxu0 0
      %282 = vmatpush.bf16.msra.mxu0 0
      %283 = vmatpush.bf16.msra.mxu0 0
      %284 = vmatpush.bf16.msra.mxu0 %v276
      %285 = vmatpush.bf16.msra.mxu0 %v258
      %286 = vmatmul.bf16.gmra.mxu0 %v263
      %v287 = vpop.f32.mrf.mxu0
      %v288 = vadd.f32 0.0, %v287
      %v289 = vpop.f32.mrf.mxu0
      %v290 = vadd.f32 0.0, %v289
      %291 = vmatmul.bf16.gmra.mxu0 %v266
      %v292 = vpop.f32.mrf.mxu0
      %v293 = vadd.f32 0.0, %v292
      %v294 = vpop.f32.mrf.mxu0
      %v295 = vadd.f32 0.0, %v294
      %296 = vmatmul.bf16.gmra.mxu0 %v269
      %v297 = vpop.f32.mrf.mxu0
      %v298 = vadd.f32 0.0, %v297
      %v299 = vpop.f32.mrf.mxu0
      %v300 = vadd.f32 0.0, %v299
      %301 = vmatmul.bf16.gmra.mxu0 %v272
      %v302 = vpop.f32.mrf.mxu0
      %v303 = vadd.f32 0.0, %v302
      %v304 = vpop.f32.mrf.mxu0
      %v305 = vadd.f32 0.0, %v304
      %306 = vdwg.mxu0
      %v308 = vunpack.c.l.b16 %v216
      %v309 = vpack.c.b16 %v240, %v308
      %v310 = vpack.c.b16 %v242, %v241
      %v311 = vpack.c.b16 %v244, %v243
      %v312 = vpack.c.b16 %v246, %v245
      %v316 = vunpack.c.l.b16 %v224
      %v317 = vunpack.c.l.b16 %v225
      %v318 = vunpack.c.l.b16 %v226
      %v319 = vpack.c.b16 %v317, %v316
      %v320 = vpack.c.b16 %v318, %v318
      %v323 = vsel %vm261, %v309, 0
      %v326 = vsel %vm261, %v310, 0
      %v329 = vsel %vm261, %v311, 0
      %v332 = vsel %vm261, %v312, 0
      %v335 = vsel %vm274, %v320, 0
      %337 = vmatpush.bf16.msra.mxu0 0
      %338 = vmatpush.bf16.msra.mxu0 0
      %339 = vmatpush.bf16.msra.mxu0 0
      %340 = vmatpush.bf16.msra.mxu0 0
      %341 = vmatpush.bf16.msra.mxu0 0
      %342 = vmatpush.bf16.msra.mxu0 0
      %343 = vmatpush.bf16.msra.mxu0 %v335
      %344 = vmatpush.bf16.msra.mxu0 %v319
      %345 = vmatmul.bf16.gmra.mxu0 %v323
      %v346 = vpop.f32.mrf.mxu0
      %v347 = vadd.f32 %v288, %v346
      %v348 = vpop.f32.mrf.mxu0
      %v349 = vadd.f32 %v290, %v348
      %350 = vmatmul.bf16.gmra.mxu0 %v326
      %v351 = vpop.f32.mrf.mxu0
      %v352 = vadd.f32 %v293, %v351
      %v353 = vpop.f32.mrf.mxu0
      %v354 = vadd.f32 %v295, %v353
      %355 = vmatmul.bf16.gmra.mxu0 %v329
      %v356 = vpop.f32.mrf.mxu0
      %v357 = vadd.f32 %v298, %v356
      %v358 = vpop.f32.mrf.mxu0
      %v359 = vadd.f32 %v300, %v358
      %360 = vmatmul.bf16.gmra.mxu0 %v332
      %v361 = vpop.f32.mrf.mxu0
      %v362 = vadd.f32 %v303, %v361
      %v363 = vpop.f32.mrf.mxu0
      %v364 = vadd.f32 %v305, %v363
      %365 = vdwg.mxu0
      %v366 = vld [vmem:[%s203 + $0x8] sm:$0xf]
      %v367 = vld [vmem:[%s203 + $0xc] sm:$0xf]
      %v368 = vld [vmem:[%s203 + $0x10] sm:$0xf]
      %v369 = vld [vmem:[%s203 + $0x14] sm:$0xf]
      %v370 = vld [vmem:[%s203 + $0x18] sm:$0xf]
      %v371 = vld [vmem:[%s203 + $0x1c] sm:$0xf]
      %v372 = vld [vmem:[%s203 + $0x20] sm:$0xf]
      %v373 = vld [vmem:[%s203 + $0x24] sm:$0xf]
      %s374 = scalar_lea.vmem %s1, 24
      %v375 = vld [vmem:[%s374] sm:$0xf]
      %v376 = vld [vmem:[%s374 + $0x4] sm:$0xf]
      %v377 = vld [vmem:[%s374 + $0x8] sm:$0xf]
      %v386 = vunpack.c.l.b16 %v366
      %v387 = vunpack.c.l.b16 %v367
      %v388 = vunpack.c.l.b16 %v368
      %v389 = vunpack.c.l.b16 %v369
      %v390 = vunpack.c.l.b16 %v370
      %v391 = vunpack.c.l.b16 %v371
      %v392 = vunpack.c.l.b16 %v372
      %v393 = vunpack.c.l.b16 %v373
      %v394 = vpack.c.b16 %v387, %v386
      %v395 = vpack.c.b16 %v389, %v388
      %v396 = vpack.c.b16 %v391, %v390
      %v397 = vpack.c.b16 %v393, %v392
      %v401 = vunpack.c.l.b16 %v375
      %v402 = vunpack.c.l.b16 %v376
      %v403 = vunpack.c.l.b16 %v377
      %v404 = vpack.c.b16 %v402, %v401
      %v405 = vpack.c.b16 %v403, %v403
      %v408 = vsel %vm261, %v394, 0
      %v411 = vsel %vm261, %v395, 0
      %v414 = vsel %vm261, %v396, 0
      %v417 = vsel %vm261, %v397, 0
      %v420 = vsel %vm274, %v405, 0
      %422 = vmatpush.bf16.msra.mxu0 0
      %423 = vmatpush.bf16.msra.mxu0 0
      %424 = vmatpush.bf16.msra.mxu0 0
      %425 = vmatpush.bf16.msra.mxu0 0
      %426 = vmatpush.bf16.msra.mxu0 0
      %427 = vmatpush.bf16.msra.mxu0 0
      %428 = vmatpush.bf16.msra.mxu0 %v420
      %429 = vmatpush.bf16.msra.mxu0 %v404
      %430 = vmatmul.bf16.gmra.mxu0 %v408
      %v431 = vpop.f32.mrf.mxu0
      %v432 = vadd.f32 0.0, %v431
      %v433 = vpop.f32.mrf.mxu0
      %v434 = vadd.f32 0.0, %v433
      %435 = vmatmul.bf16.gmra.mxu0 %v411
      %v436 = vpop.f32.mrf.mxu0
      %v437 = vadd.f32 0.0, %v436
      %v438 = vpop.f32.mrf.mxu0
      %v439 = vadd.f32 0.0, %v438
      %440 = vmatmul.bf16.gmra.mxu0 %v414
      %v441 = vpop.f32.mrf.mxu0
      %v442 = vadd.f32 0.0, %v441
      %v443 = vpop.f32.mrf.mxu0
      %v444 = vadd.f32 0.0, %v443
      %445 = vmatmul.bf16.gmra.mxu0 %v417
      %v446 = vpop.f32.mrf.mxu0
      %v447 = vadd.f32 0.0, %v446
      %v448 = vpop.f32.mrf.mxu0
      %v449 = vadd.f32 0.0, %v448
      %450 = vdwg.mxu0
      %v451 = vadd.f32 %v347, %v432
      %v452 = vadd.f32 %v349, %v434
      %v453 = vadd.f32 %v352, %v437
      %v454 = vadd.f32 %v354, %v439
      %v455 = vadd.f32 %v357, %v442
      %v456 = vadd.f32 %v359, %v444
      %v457 = vadd.f32 %v362, %v447
      %v458 = vadd.f32 %v364, %v449
      %v459 = vpack.c.bf16 %v451, %v451
      %v460 = vpack.c.bf16 %v452, %v452
      %v461 = vpack.c.bf16 %v453, %v453
      %v462 = vpack.c.bf16 %v454, %v454
      %v463 = vpack.c.bf16 %v455, %v455
      %v464 = vpack.c.bf16 %v456, %v456
      %v465 = vpack.c.bf16 %v457, %v457
      %v466 = vpack.c.bf16 %v458, %v458
      %467 = vst [vmem:[%s208] sm:$0xf] %v459
      %468 = vst [vmem:[%s208 + $0x4] sm:$0xf] %v460
      %469 = vst [vmem:[%s208 + $0x8] sm:$0xf] %v461
      %470 = vst [vmem:[%s208 + $0xc] sm:$0xf] %v462
      %471 = vst [vmem:[%s208 + $0x10] sm:$0xf] %v463
      %472 = vst [vmem:[%s208 + $0x14] sm:$0xf] %v464
      %473 = vst [vmem:[%s208 + $0x18] sm:$0xf] %v465
      %474 = vst [vmem:[%s208 + $0x1c] sm:$0xf] %v466
      %v475 = vadd.f32 %v451, %v452
      %v476 = vadd.f32 %v475, %v453
      %v477 = vadd.f32 %v476, %v454
      %v478 = vadd.f32 %v477, %v455
      %v479 = vadd.f32 %v478, %v456
      %v480 = vadd.f32 %v479, %v457
      %v481 = vadd.f32 %v480, %v458
      %v482 = vrot.slane %v481, 4
      %v483 = vadd.f32 %v481, %v482
      %v484 = vrot.slane %v483, 2
      %v485 = vadd.f32 %v483, %v484
      %v486 = vrot.slane %v485, 1
      %v487 = vadd.f32 %v485, %v486
      %488 = vst [vmem:[%s211] sm:$0x1] %v487
      %v489 = vmul.f32 %v451, %v451
      %v490 = vmul.f32 %v452, %v452
      %v491 = vmul.f32 %v453, %v453
      %v492 = vmul.f32 %v454, %v454
      %v493 = vmul.f32 %v455, %v455
      %v494 = vmul.f32 %v456, %v456
      %v495 = vmul.f32 %v457, %v457
      %v496 = vmul.f32 %v458, %v458
      %v497 = vadd.f32 %v489, %v490
      %v498 = vadd.f32 %v497, %v491
      %v499 = vadd.f32 %v498, %v492
      %v500 = vadd.f32 %v499, %v493
      %v501 = vadd.f32 %v500, %v494
      %v502 = vadd.f32 %v501, %v495
      %v503 = vadd.f32 %v502, %v496
      %v504 = vrot.slane %v503, 4
      %v505 = vadd.f32 %v503, %v504
      %v506 = vrot.slane %v505, 2
      %v507 = vadd.f32 %v505, %v506
      %v508 = vrot.slane %v507, 1
      %v509 = vadd.f32 %v507, %v508
      %510 = vst [vmem:[%s214] sm:$0x1] %v509
      %p511 = scmp.lt.s32.totalorder %s16, 1
      %s512 = scalar_select %p511, %s16, 1
      %s513 = smul.addr %s512, 8
      %s514 = smul.addr %s513, 4
      %s515 = scalar_lea.vmem %s2, %s514
      %p516 = scmp.lt.s32.totalorder %s16, 1
      %s517 = scalar_select %p516, %s16, 1
      %s518 = scalar_lea.vmem %s3, %s517
      %p519 = scmp.lt.s32.totalorder %s16, 1
      %s520 = scalar_select %p519, %s16, 1
      %s521 = scalar_lea.vmem %s4, %s520
      // Predicated region
      $region29: #{preact_block_forward.8} parent=27 // pred_check
        %p522 = pneg %p81
      $region30: #{preact_block_forward.8} parent=27 // pred_check_branch
        %524 = sbr.rel (%p522) target = $region32
      $region31: #{preact_block_forward.8} parent=27 // pred_region
        _
      $region32: #{preact_block_forward.8} parent=27 // pred_fallthru
        _
      // Predicated region
      $region33: #{preact_block_forward.8} parent=27 // pred_check
        %p525 = pneg %p107
      $region34: #{preact_block_forward.8} parent=27 // pred_check_branch
        %527 = sbr.rel (%p525) target = $region36
      $region35: #{preact_block_forward.8} parent=27 // pred_region
        _
      $region36: #{preact_block_forward.8} parent=27 // pred_fallthru
        _
      // Predicated region
      $region37: #{preact_block_forward.8} parent=27 // pred_check
        %p528 = pneg %p133
      $region38: #{preact_block_forward.8} parent=27 // pred_check_branch
        %530 = sbr.rel (%p528) target = $region40
      $region39: #{preact_block_forward.8} parent=27 // pred_region
        _
      $region40: #{preact_block_forward.8} parent=27 // pred_fallthru
        _
    $region28: #{preact_block_forward.8} parent=5 // pred_fallthru
      _
    %p531 = scmp.le.s32.totalorder 2, %s11
    // Predicated region
    $region41: #{preact_block_forward.8} parent=5 // pred_check
      %p532 = pneg %p531
    $region42: #{preact_block_forward.8} parent=5 // pred_check_branch
      %534 = sbr.rel (%p532) target = $region44
    $region43: #{preact_block_forward.8} parent=5 // pred_region
      %s535 = ssub.s32 %s11, 2
      // Predicated region
      $region45: #{preact_block_forward.8} parent=43 // pred_check
        %p536 = pneg %p87
      $region46: #{preact_block_forward.8} parent=43 // pred_check_branch
        %538 = sbr.rel (%p536) target = $region48
      $region47: #{preact_block_forward.8} parent=43 // pred_region
        %p539 = scmp.lt.s32.totalorder %s17, 1
        %s540 = scalar_select %p539, %s17, 1
        %s541 = smul.addr %s540, 8
        %s542 = smul.addr %s541, 4
        %s543 = scalar_lea.vmem %s2, %s542
      $region48: #{preact_block_forward.8} parent=43 // pred_fallthru
        _
      // Predicated region
      $region49: #{preact_block_forward.8} parent=43 // pred_check
        %p544 = pneg %p113
      $region50: #{preact_block_forward.8} parent=43 // pred_check_branch
        %546 = sbr.rel (%p544) target = $region52
      $region51: #{preact_block_forward.8} parent=43 // pred_region
        %p547 = scmp.lt.s32.totalorder %s17, 1
        %s548 = scalar_select %p547, %s17, 1
        %s549 = scalar_lea.vmem %s3, %s548
      $region52: #{preact_block_forward.8} parent=43 // pred_fallthru
        _
      // Predicated region
      $region53: #{preact_block_forward.8} parent=43 // pred_check
        %p550 = pneg %p139
      $region54: #{preact_block_forward.8} parent=43 // pred_check_branch
        %552 = sbr.rel (%p550) target = $region56
      $region55: #{preact_block_forward.8} parent=43 // pred_region
        %p553 = scmp.lt.s32.totalorder %s17, 1
        %s554 = scalar_select %p553, %s17, 1
        %s555 = scalar_lea.vmem %s4, %s554
      $region56: #{preact_block_forward.8} parent=43 // pred_fallthru
        _
    $region44: #{preact_block_forward.8} parent=5 // pred_fallthru
      _
  $region6: #{preact_block_forward.8} parent=0 // loop_footer
    %s15 = sadd.s32 1, %s11
  $region7: #{preact_block_forward.8} parent=0 // loop_footer_branch
    %10 = sbr.rel target = $region3
  $region8: #{preact_block_forward.8} parent=0 // loop_exit
    _

// kernel: preact_block_forward.6
$region0: #{preact_block_forward.6}
  #allocation0 [shape = 'u32[]', space=smem, size = 0x4, offset = 0x4, fixed_abs, tag = 'smem constant byte address 0x4 - core index']
  #allocation1 [shape = 'u32[72,128]{1,0:T(1,128)}', space=vmem, size = 0x9000, scoped, tag = 'internal scratch']
  %s0 = inlined_call_operand.vmem [shape: bf16[2,64,8], index: 0, kind: input, shape index: {}]
  %s1 = inlined_call_operand.vmem [shape: bf16[1,8,128], index: 1, kind: input, shape index: {}]
  %s2 = inlined_call_operand.vmem [shape: bf16[2,64,128], index: 2, kind: output, shape index: {0}]
  %s3 = inlined_call_operand.vmem [shape: f32[2,1,128], index: 3, kind: output, shape index: {1}]
  %s4 = inlined_call_operand.vmem [shape: f32[2,1,128], index: 4, kind: output, shape index: {2}]
  %5 = xla_tuple %s2, %s3, %s4
  %s6 = sld [smem:[#allocation0]]
  $region57: #{preact_block_forward.6} parent=0
    _
  %s8 = ssub.s32 1, %s6
  %s9 = scalar_select 0, %s8, %s6
  loop: start=0, step=1, limit=4
  $region2: #{preact_block_forward.6} parent=0 // loop_pre_header
    _
  $region3: #{preact_block_forward.6} parent=0 // loop_header
    %s11 = sphi 0, %s15
    %p12 = scmp.ge.s32.totalorder %s11, 4
    %s21 = sphi 0, %s23
    %s24 = sphi 0, %s21
    %s25 = sphi 0, %s24
    %s41 = sphi 0, %s25
    %s45 = sphi 0, %s45
    %s47 = sphi 0, %s45
    %s48 = sphi 0, %s47
    %s62 = sphi 0, %s48
    %s68 = sphi 0, %s70
    %s71 = sphi 0, %s68
    %s72 = sphi 0, %s71
    %s88 = sphi 0, %s72
    %s94 = sphi 0, %s96
    %s97 = sphi 0, %s94
    %s98 = sphi 0, %s97
    %s114 = sphi 0, %s98
    %s120 = sphi 0, %s122
    %s123 = sphi 0, %s120
    %s124 = sphi 0, %s123
    %s140 = sphi 0, %s124
  $region4: #{preact_block_forward.6} parent=0 // loop_header_branch
    %14 = sbr.rel (%p12) target = $region8
  $region5: #{preact_block_forward.6} parent=0 // loop_body
    %s16 = ssub.s32 %s11, 1
    %s17 = ssub.s32 %s11, 2
    %s18 = sadd.s32 %s11, 1
    %s19 = ssub.s32 %s11, %s18
    %p20 = scmp.eq.s32.totalorder %s19, 0
    %s22 = sadd.s32 %s21, 1
    %s23 = scalar_select %p20, %s21, %s22
    %p26 = pneg %p20
    %p27 = scmp.eq.s32.totalorder %s11, 1
    %p28 = por %p26, %p27
    %p29 = scmp.ne.s32.totalorder %s21, %s24
    %p30 = scmp.eq.s32.totalorder %s11, 0
    %p31 = por %p29, %p30
    %p32 = scmp.ne.s32.totalorder %s21, %s24
    %p33 = scmp.eq.s32.totalorder %s16, 1
    %p34 = por %p32, %p33
    %p35 = scmp.ne.s32.totalorder %s24, %s25
    %p36 = scmp.eq.s32.totalorder %s16, 0
    %p37 = por %p35, %p36
    %p38 = scmp.ne.s32.totalorder %s24, %s25
    %p39 = scmp.eq.s32.totalorder %s17, 1
    %p40 = por %p38, %p39
    %p42 = scmp.ne.s32.totalorder %s25, %s41
    %p43 = scmp.eq.s32.totalorder %s17, 0
    %p44 = por %p42, %p43
    %s46 = sadd.s32 %s45, 1
    %p49 = scmp.eq.s32.totalorder %s11, 1
    %p50 = scmp.ne.s32.totalorder %s45, %s47
    %p51 = scmp.eq.s32.totalorder %s11, 0
    %p52 = por %p50, %p51
    %p53 = scmp.ne.s32.totalorder %s45, %s47
    %p54 = scmp.eq.s32.totalorder %s16, 1
    %p55 = por %p53, %p54
    %p56 = scmp.ne.s32.totalorder %s47, %s48
    %p57 = scmp.eq.s32.totalorder %s16, 0
    %p58 = por %p56, %p57
    %p59 = scmp.ne.s32.totalorder %s47, %s48
    %p60 = scmp.eq.s32.totalorder %s17, 1
    %p61 = por %p59, %p60
    %p63 = scmp.ne.s32.totalorder %s48, %s62
    %p64 = scmp.eq.s32.totalorder %s17, 0
    %p65 = por %p63, %p64
    %s66 = ssub.s32 %s11, %s18
    %p67 = scmp.eq.s32.totalorder %s66, 0
    %s69 = sadd.s32 %s68, 1
    %s70 = scalar_select %p67, %s68, %s69
    %p73 = pneg %p67
    %p74 = scmp.eq.s32.totalorder %s11, 1
    %p75 = por %p73, %p74
    %p76 = scmp.ne.s32.totalorder %s68, %s71
    %p77 = scmp.eq.s32.totalorder %s11, 0
    %p78 = por %p76, %p77
    %p79 = scmp.ne.s32.totalorder %s68, %s71
    %p80 = scmp.eq.s32.totalorder %s16, 1
    %p81 = por %p79, %p80
    %p82 = scmp.ne.s32.totalorder %s71, %s72
    %p83 = scmp.eq.s32.totalorder %s16, 0
    %p84 = por %p82, %p83
    %p85 = scmp.ne.s32.totalorder %s71, %s72
    %p86 = scmp.eq.s32.totalorder %s17, 1
    %p87 = por %p85, %p86
    %p89 = scmp.ne.s32.totalorder %s72, %s88
    %p90 = scmp.eq.s32.totalorder %s17, 0
    %p91 = por %p89, %p90
    %s92 = ssub.s32 %s11, %s18
    %p93 = scmp.eq.s32.totalorder %s92, 0
    %s95 = sadd.s32 %s94, 1
    %s96 = scalar_select %p93, %s94, %s95
    %p99 = pneg %p93
    %p100 = scmp.eq.s32.totalorder %s11, 1
    %p101 = por %p99, %p100
    %p102 = scmp.ne.s32.totalorder %s94, %s97
    %p103 = scmp.eq.s32.totalorder %s11, 0
    %p104 = por %p102, %p103
    %p105 = scmp.ne.s32.totalorder %s94, %s97
    %p106 = scmp.eq.s32.totalorder %s16, 1
    %p107 = por %p105, %p106
    %p108 = scmp.ne.s32.totalorder %s97, %s98
    %p109 = scmp.eq.s32.totalorder %s16, 0
    %p110 = por %p108, %p109
    %p111 = scmp.ne.s32.totalorder %s97, %s98
    %p112 = scmp.eq.s32.totalorder %s17, 1
    %p113 = por %p111, %p112
    %p115 = scmp.ne.s32.totalorder %s98, %s114
    %p116 = scmp.eq.s32.totalorder %s17, 0
    %p117 = por %p115, %p116
    %s118 = ssub.s32 %s11, %s18
    %p119 = scmp.eq.s32.totalorder %s118, 0
    %s121 = sadd.s32 %s120, 1
    %s122 = scalar_select %p119, %s120, %s121
    %p125 = pneg %p119
    %p126 = scmp.eq.s32.totalorder %s11, 1
    %p127 = por %p125, %p126
    %p128 = scmp.ne.s32.totalorder %s120, %s123
    %p129 = scmp.eq.s32.totalorder %s11, 0
    %p130 = por %p128, %p129
    %p131 = scmp.ne.s32.totalorder %s120, %s123
    %p132 = scmp.eq.s32.totalorder %s16, 1
    %p133 = por %p131, %p132
    %p134 = scmp.ne.s32.totalorder %s123, %s124
    %p135 = scmp.eq.s32.totalorder %s16, 0
    %p136 = por %p134, %p135
    %p137 = scmp.ne.s32.totalorder %s123, %s124
    %p138 = scmp.eq.s32.totalorder %s17, 1
    %p139 = por %p137, %p138
    %p141 = scmp.ne.s32.totalorder %s124, %s140
    %p142 = scmp.eq.s32.totalorder %s17, 0
    %p143 = por %p141, %p142
    %p144 = scmp.le.s32.totalorder 1, %s11
    %p145 = scmp.lt.s32.totalorder %s11, 3
    %p146 = pnand %p144, %p145
    %p147 = pneg %p146
    // Predicated region
    $region9: #{preact_block_forward.6} parent=5 // pred_check
      _
    $region10: #{preact_block_forward.6} parent=5 // pred_check_branch
      %149 = sbr.rel (%p146) target = $region12
    $region11: #{preact_block_forward.6} parent=5 // pred_region
      %s150 = ssub.s32 %s11, 1
      // Predicated region
      $region13: #{preact_block_forward.6} parent=11 // pred_check
        %p151 = pneg %p58
      $region14: #{preact_block_forward.6} parent=11 // pred_check_branch
        %153 = sbr.rel (%p151) target = $region16
      $region15: #{preact_block_forward.6} parent=11 // pred_region
        _
      $region16: #{preact_block_forward.6} parent=11 // pred_fallthru
        _
    $region12: #{preact_block_forward.6} parent=5 // pred_fallthru
      _
    %p154 = scmp.lt.s32.totalorder %s11, 2
    // Predicated region
    $region17: #{preact_block_forward.6} parent=5 // pred_check
      %p155 = pneg %p154
    $region18: #{preact_block_forward.6} parent=5 // pred_check_branch
      %157 = sbr.rel (%p155) target = $region20
    $region19: #{preact_block_forward.6} parent=5 // pred_region
      // Predicated region
      $region21: #{preact_block_forward.6} parent=19 // pred_check
        %p158 = pneg %p31
      $region22: #{preact_block_forward.6} parent=19 // pred_check_branch
        %160 = sbr.rel (%p158) target = $region24
      $region23: #{preact_block_forward.6} parent=19 // pred_region
        %p161 = scmp.lt.s32.totalorder %s11, 1
        %s162 = scalar_select %p161, %s11, 1
        %s163 = smul.addr %s162, 8
        %s164 = smul.addr %s163, 4
        %s165 = scalar_lea.vmem %s0, %s164
      $region24: #{preact_block_forward.6} parent=19 // pred_fallthru
        _
    $region20: #{preact_block_forward.6} parent=5 // pred_fallthru
      _
    %p166 = scmp.le.s32.totalorder 1, %s11
    %p167 = scmp.lt.s32.totalorder %s11, 3
    %p168 = pnand %p166, %p167
    %p169 = pneg %p168
    // Predicated region
    $region25: #{preact_block_forward.6} parent=5 // pred_check
      _
    $region26: #{preact_block_forward.6} parent=5 // pred_check_branch
      %171 = sbr.rel (%p168) target = $region28
    $region27: #{preact_block_forward.6} parent=5 // pred_region
      %s172 = ssub.s32 %s11, 1
      %p173 = scmp.lt.s32.totalorder %s16, 1
      %s174 = scalar_select %p173, %s16, 1
      %s175 = smul.addr %s174, 8
      %s176 = smul.addr %s175, 4
      %s177 = scalar_lea.vmem %s0, %s176
      %p178 = pneg %p37
      %p179 = pneg %p34
      %p180 = pneg %p58
      %p181 = pneg %p55
      %p182 = pneg %p84
      %p183 = pneg %p81
      %p184 = scmp.lt.s32.totalorder %s16, 1
      %s185 = scalar_select %p184, %s16, 1
      %s186 = smul.addr %s185, 8
      %s187 = smul.addr %s186, 4
      %s188 = scalar_lea.vmem %s2, %s187
      %p189 = pneg %p110
      %p190 = pneg %p107
      %p191 = scmp.lt.s32.totalorder %s16, 1
      %s192 = scalar_select %p191, %s16, 1
      %s193 = scalar_lea.vmem %s3, %s192
      %p194 = pneg %p136
      %p195 = pneg %p133
      %p196 = scmp.lt.s32.totalorder %s16, 1
      %s197 = scalar_select %p196, %s16, 1
      %s198 = scalar_lea.vmem %s4, %s197
      %p199 = scmp.lt.s32.totalorder %s16, 1
      %s200 = scalar_select %p199, %s16, 1
      %s201 = smul.addr %s200, 8
      %s202 = smul.addr %s201, 4
      %s203 = scalar_lea.vmem %s0, %s202
      %p204 = scmp.lt.s32.totalorder %s16, 1
      %s205 = scalar_select %p204, %s16, 1
      %s206 = smul.addr %s205, 8
      %s207 = smul.addr %s206, 4
      %s208 = scalar_lea.vmem %s2, %s207
      %p209 = scmp.lt.s32.totalorder %s16, 1
      %s210 = scalar_select %p209, %s16, 1
      %s211 = scalar_lea.vmem %s3, %s210
      %p212 = scmp.lt.s32.totalorder %s16, 1
      %s213 = scalar_select %p212, %s16, 1
      %s214 = scalar_lea.vmem %s4, %s213
      %v216 = vld [vmem:[%s203] sm:$0xf]
      %v217 = vld [vmem:[%s203 + $0x4] sm:$0xf]
      %v218 = vld [vmem:[%s203 + $0x8] sm:$0xf]
      %v219 = vld [vmem:[%s203 + $0xc] sm:$0xf]
      %v220 = vld [vmem:[%s203 + $0x10] sm:$0xf]
      %v221 = vld [vmem:[%s203 + $0x14] sm:$0xf]
      %v222 = vld [vmem:[%s203 + $0x18] sm:$0xf]
      %v223 = vld [vmem:[%s203 + $0x1c] sm:$0xf]
      %v224 = vld [vmem:[%s1] sm:$0xf]
      %v233 = vunpack.c.l.b16 %v216
      %v234 = vunpack.c.l.b16 %v217
      %v235 = vunpack.c.l.b16 %v218
      %v236 = vunpack.c.l.b16 %v219
      %v237 = vunpack.c.l.b16 %v220
      %v238 = vunpack.c.l.b16 %v221
      %v239 = vunpack.c.l.b16 %v222
      %v240 = vunpack.c.l.b16 %v223
      %v241 = vpack.c.b16 %v234, %v233
      %v242 = vpack.c.b16 %v236, %v235
      %v243 = vpack.c.b16 %v238, %v237
      %v244 = vpack.c.b16 %v240, %v239
      %vm245 = vcmask 64512
      %v247 = vsel %vm245, %v241, 0
      %v250 = vsel %vm245, %v242, 0
      %v253 = vsel %vm245, %v243, 0
      %v256 = vsel %vm245, %v244, 0
      %vm258 = vcmask 1043456
      %v260 = vsel %vm258, %v224, 0
      %262 = vmatpush.bf16.msra.mxu0 0
      %263 = vmatpush.bf16.msra.mxu0 0
      %264 = vmatpush.bf16.msra.mxu0 0
      %265 = vmatpush.bf16.msra.mxu0 0
      %266 = vmatpush.bf16.msra.mxu0 0
      %267 = vmatpush.bf16.msra.mxu0 0
      %268 = vmatpush.bf16.msra.mxu0 0
      %269 = vmatpush.bf16.msra.mxu0 %v260
      %270 = vmatmul.bf16.gmra.mxu0 %v247
      %v271 = vpop.f32.mrf.mxu0
      %v272 = vadd.f32 0.0, %v271
      %v273 = vpop.f32.mrf.mxu0
      %v274 = vadd.f32 0.0, %v273
      %275 = vmatmul.bf16.gmra.mxu0 %v250
      %v276 = vpop.f32.mrf.mxu0
      %v277 = vadd.f32 0.0, %v276
      %v278 = vpop.f32.mrf.mxu0
      %v279 = vadd.f32 0.0, %v278
      %280 = vmatmul.bf16.gmra.mxu0 %v253
      %v281 = vpop.f32.mrf.mxu0
      %v282 = vadd.f32 0.0, %v281
      %v283 = vpop.f32.mrf.mxu0
      %v284 = vadd.f32 0.0, %v283
      %285 = vmatmul.bf16.gmra.mxu0 %v256
      %v286 = vpop.f32.mrf.mxu0
      %v287 = vadd.f32 0.0, %v286
      %v288 = vpop.f32.mrf.mxu0
      %v289 = vadd.f32 0.0, %v288
      %290 = vdwg.mxu0
      %v291 = vpack.c.bf16 %v272, %v272
      %v292 = vpack.c.bf16 %v274, %v274
      %v293 = vpack.c.bf16 %v277, %v277
      %v294 = vpack.c.bf16 %v279, %v279
      %v295 = vpack.c.bf16 %v282, %v282
      %v296 = vpack.c.bf16 %v284, %v284
      %v297 = vpack.c.bf16 %v287, %v287
      %v298 = vpack.c.bf16 %v289, %v289
      %299 = vst [vmem:[%s208] sm:$0xf] %v291
      %300 = vst [vmem:[%s208 + $0x4] sm:$0xf] %v292
      %301 = vst [vmem:[%s208 + $0x8] sm:$0xf] %v293
      %302 = vst [vmem:[%s208 + $0xc] sm:$0xf] %v294
      %303 = vst [vmem:[%s208 + $0x10] sm:$0xf] %v295
      %304 = vst [vmem:[%s208 + $0x14] sm:$0xf] %v296
      %305 = vst [vmem:[%s208 + $0x18] sm:$0xf] %v297
      %306 = vst [vmem:[%s208 + $0x1c] sm:$0xf] %v298
      %v307 = vadd.f32 %v272, %v274
      %v308 = vadd.f32 %v307, %v277
      %v309 = vadd.f32 %v308, %v279
      %v310 = vadd.f32 %v309, %v282
      %v311 = vadd.f32 %v310, %v284
      %v312 = vadd.f32 %v311, %v287
      %v313 = vadd.f32 %v312, %v289
      %v314 = vrot.slane %v313, 4
      %v315 = vadd.f32 %v313, %v314
      %v316 = vrot.slane %v315, 2
      %v317 = vadd.f32 %v315, %v316
      %v318 = vrot.slane %v317, 1
      %v319 = vadd.f32 %v317, %v318
      %320 = vst [vmem:[%s211] sm:$0x1] %v319
      %v321 = vmul.f32 %v272, %v272
      %v322 = vmul.f32 %v274, %v274
      %v323 = vmul.f32 %v277, %v277
      %v324 = vmul.f32 %v279, %v279
      %v325 = vmul.f32 %v282, %v282
      %v326 = vmul.f32 %v284, %v284
      %v327 = vmul.f32 %v287, %v287
      %v328 = vmul.f32 %v289, %v289
      %v329 = vadd.f32 %v321, %v322
      %v330 = vadd.f32 %v329, %v323
      %v331 = vadd.f32 %v330, %v324
      %v332 = vadd.f32 %v331, %v325
      %v333 = vadd.f32 %v332, %v326
      %v334 = vadd.f32 %v333, %v327
      %v335 = vadd.f32 %v334, %v328
      %v336 = vrot.slane %v335, 4
      %v337 = vadd.f32 %v335, %v336
      %v338 = vrot.slane %v337, 2
      %v339 = vadd.f32 %v337, %v338
      %v340 = vrot.slane %v339, 1
      %v341 = vadd.f32 %v339, %v340
      %342 = vst [vmem:[%s214] sm:$0x1] %v341
      %p343 = scmp.lt.s32.totalorder %s16, 1
      %s344 = scalar_select %p343, %s16, 1
      %s345 = smul.addr %s344, 8
      %s346 = smul.addr %s345, 4
      %s347 = scalar_lea.vmem %s2, %s346
      %p348 = scmp.lt.s32.totalorder %s16, 1
      %s349 = scalar_select %p348, %s16, 1
      %s350 = scalar_lea.vmem %s3, %s349
      %p351 = scmp.lt.s32.totalorder %s16, 1
      %s352 = scalar_select %p351, %s16, 1
      %s353 = scalar_lea.vmem %s4, %s352
      // Predicated region
      $region29: #{preact_block_forward.6} parent=27 // pred_check
        %p354 = pneg %p81
      $region30: #{preact_block_forward.6} parent=27 // pred_check_branch
        %356 = sbr.rel (%p354) target = $region32
      $region31: #{preact_block_forward.6} parent=27 // pred_region
        _
      $region32: #{preact_block_forward.6} parent=27 // pred_fallthru
        _
      // Predicated region
      $region33: #{preact_block_forward.6} parent=27 // pred_check
        %p357 = pneg %p107
      $region34: #{preact_block_forward.6} parent=27 // pred_check_branch
        %359 = sbr.rel (%p357) target = $region36
      $region35: #{preact_block_forward.6} parent=27 // pred_region
        _
      $region36: #{preact_block_forward.6} parent=27 // pred_fallthru
        _
      // Predicated region
      $region37: #{preact_block_forward.6} parent=27 // pred_check
        %p360 = pneg %p133
      $region38: #{preact_block_forward.6} parent=27 // pred_check_branch
        %362 = sbr.rel (%p360) target = $region40
      $region39: #{preact_block_forward.6} parent=27 // pred_region
        _
      $region40: #{preact_block_forward.6} parent=27 // pred_fallthru
        _
    $region28: #{preact_block_forward.6} parent=5 // pred_fallthru
      _
    %p363 = scmp.le.s32.totalorder 2, %s11
    // Predicated region
    $region41: #{preact_block_forward.6} parent=5 // pred_check
      %p364 = pneg %p363
    $region42: #{preact_block_forward.6} parent=5 // pred_check_branch
      %366 = sbr.rel (%p364) target = $region44
    $region43: #{preact_block_forward.6} parent=5 // pred_region
      %s367 = ssub.s32 %s11, 2
      // Predicated region
      $region45: #{preact_block_forward.6} parent=43 // pred_check
        %p368 = pneg %p87
      $region46: #{preact_block_forward.6} parent=43 // pred_check_branch
        %370 = sbr.rel (%p368) target = $region48
      $region47: #{preact_block_forward.6} parent=43 // pred_region
        %p371 = scmp.lt.s32.totalorder %s17, 1
        %s372 = scalar_select %p371, %s17, 1
        %s373 = smul.addr %s372, 8
        %s374 = smul.addr %s373, 4
        %s375 = scalar_lea.vmem %s2, %s374
      $region48: #{preact_block_forward.6} parent=43 // pred_fallthru
        _
      // Predicated region
      $region49: #{preact_block_forward.6} parent=43 // pred_check
        %p376 = pneg %p113
      $region50: #{preact_block_forward.6} parent=43 // pred_check_branch
        %378 = sbr.rel (%p376) target = $region52
      $region51: #{preact_block_forward.6} parent=43 // pred_region
        %p379 = scmp.lt.s32.totalorder %s17, 1
        %s380 = scalar_select %p379, %s17, 1
        %s381 = scalar_lea.vmem %s3, %s380
      $region52: #{preact_block_forward.6} parent=43 // pred_fallthru
        _
      // Predicated region
      $region53: #{preact_block_forward.6} parent=43 // pred_check
        %p382 = pneg %p139
      $region54: #{preact_block_forward.6} parent=43 // pred_check_branch
        %384 = sbr.rel (%p382) target = $region56
      $region55: #{preact_block_forward.6} parent=43 // pred_region
        %p385 = scmp.lt.s32.totalorder %s17, 1
        %s386 = scalar_select %p385, %s17, 1
        %s387 = scalar_lea.vmem %s4, %s386
      $region56: #{preact_block_forward.6} parent=43 // pred_fallthru
        _
    $region44: #{preact_block_forward.6} parent=5 // pred_fallthru
      _
  $region6: #{preact_block_forward.6} parent=0 // loop_footer
    %s15 = sadd.s32 1, %s11
  $region7: #{preact_block_forward.6} parent=0 // loop_footer_branch
    %10 = sbr.rel target = $region3
  $region8: #{preact_block_forward.6} parent=0 // loop_exit
    _

// kernel: preact_block_forward.9
$region0: #{preact_block_forward.9}
  #allocation0 [shape = 'u32[]', space=smem, size = 0x4, offset = 0x4, fixed_abs, tag = 'smem constant byte address 0x4 - core index']
  #allocation1 [shape = 'u32[72,128]{1,0:T(1,128)}', space=vmem, size = 0x9000, scoped, tag = 'internal scratch']
  %s0 = inlined_call_operand.vmem [shape: bf16[128,128], index: 0, kind: input, shape index: {}]
  %s1 = inlined_call_operand.vmem [shape: f32[1,128], index: 1, kind: input, shape index: {}]
  %s2 = inlined_call_operand.vmem [shape: f32[1,128], index: 2, kind: input, shape index: {}]
  %s3 = inlined_call_operand.vmem [shape: bf16[128,128], index: 3, kind: input, shape index: {}]
  %s4 = inlined_call_operand.vmem [shape: f32[1,128], index: 4, kind: input, shape index: {}]
  %s5 = inlined_call_operand.vmem [shape: f32[1,128], index: 5, kind: input, shape index: {}]
  %s6 = inlined_call_operand.vmem [shape: f32[128,128], index: 6, kind: output, shape index: {}]
  %s7 = sld [smem:[#allocation0]]
  $region34: #{preact_block_forward.9} parent=0
    _
  %s9 = ssub.s32 1, %s7
  %s10 = scalar_select 0, %s9, %s7
  // Predicated region
  $region2: #{preact_block_forward.9} parent=0 // pred_check
    _
  $region3: #{preact_block_forward.9} parent=0 // pred_check_branch
    %12 = sbr.rel (0) target = $region5
  $region4: #{preact_block_forward.9} parent=0 // pred_region
    _
  $region5: #{preact_block_forward.9} parent=0 // pred_fallthru
    _
  // Predicated region
  $region6: #{preact_block_forward.9} parent=0 // pred_check
    _
  $region7: #{preact_block_forward.9} parent=0 // pred_check_branch
    %14 = sbr.rel (0) target = $region9
  $region8: #{preact_block_forward.9} parent=0 // pred_region
    _
  $region9: #{preact_block_forward.9} parent=0 // pred_fallthru
    _
  // Predicated region
  $region10: #{preact_block_forward.9} parent=0 // pred_check
    _
  $region11: #{preact_block_forward.9} parent=0 // pred_check_branch
    %16 = sbr.rel (0) target = $region13
  $region12: #{preact_block_forward.9} parent=0 // pred_region
    _
  $region13: #{preact_block_forward.9} parent=0 // pred_fallthru
    _
  // Predicated region
  $region14: #{preact_block_forward.9} parent=0 // pred_check
    _
  $region15: #{preact_block_forward.9} parent=0 // pred_check_branch
    %18 = sbr.rel (0) target = $region17
  $region16: #{preact_block_forward.9} parent=0 // pred_region
    _
  $region17: #{preact_block_forward.9} parent=0 // pred_fallthru
    _
  // Predicated region
  $region18: #{preact_block_forward.9} parent=0 // pred_check
    _
  $region19: #{preact_block_forward.9} parent=0 // pred_check_branch
    %20 = sbr.rel (0) target = $region21
  $region20: #{preact_block_forward.9} parent=0 // pred_region
    _
  $region21: #{preact_block_forward.9} parent=0 // pred_fallthru
    _
  // Predicated region
  $region22: #{preact_block_forward.9} parent=0 // pred_check
    _
  $region23: #{preact_block_forward.9} parent=0 // pred_check_branch
    %22 = sbr.rel (0) target = $region25
  $region24: #{preact_block_forward.9} parent=0 // pred_region
    _
  $region25: #{preact_block_forward.9} parent=0 // pred_fallthru
    _
  %v23 = vld [vmem:[%s0] sm:$0xf]
  %v24 = vld [vmem:[%s0 + $0x4] sm:$0xf]
  %v25 = vld [vmem:[%s0 + $0x8] sm:$0xf]
  %v26 = vld [vmem:[%s0 + $0xc] sm:$0xf]
  %v27 = vld [vmem:[%s0 + $0x10] sm:$0xf]
  %v28 = vld [vmem:[%s0 + $0x14] sm:$0xf]
  %v29 = vld [vmem:[%s0 + $0x18] sm:$0xf]
  %v30 = vld [vmem:[%s0 + $0x1c] sm:$0xf]
  %v31 = vld [vmem:[%s0 + $0x20] sm:$0xf]
  %v32 = vld [vmem:[%s0 + $0x24] sm:$0xf]
  %v33 = vld [vmem:[%s0 + $0x28] sm:$0xf]
  %v34 = vld [vmem:[%s0 + $0x2c] sm:$0xf]
  %v35 = vld [vmem:[%s0 + $0x30] sm:$0xf]
  %v36 = vld [vmem:[%s0 + $0x34] sm:$0xf]
  %v37 = vld [vmem:[%s0 + $0x38] sm:$0xf]
  %v38 = vld [vmem:[%s0 + $0x3c] sm:$0xf]
  %v39 = vunpack.c.l.bf16 %v23
  %v40 = vunpack.c.l.bf16 %v24
  %v41 = vunpack.c.l.bf16 %v25
  %v42 = vunpack.c.l.bf16 %v26
  %v43 = vunpack.c.l.bf16 %v27
  %v44 = vunpack.c.l.bf16 %v28
  %v45 = vunpack.c.l.bf16 %v29
  %v46 = vunpack.c.l.bf16 %v30
  %v47 = vunpack.c.l.bf16 %v31
  %v48 = vunpack.c.l.bf16 %v32
  %v49 = vunpack.c.l.bf16 %v33
  %v50 = vunpack.c.l.bf16 %v34
  %v51 = vunpack.c.l.bf16 %v35
  %v52 = vunpack.c.l.bf16 %v36
  %v53 = vunpack.c.l.bf16 %v37
  %v54 = vunpack.c.l.bf16 %v38
  %v55 = vld [vmem:[%s1] sm:$0x1]
  %v57 = vperm.slane %v55, 0
  %v59 = vmul.f32 %v39, %v57
  %v60 = vmul.f32 %v40, %v57
  %v61 = vmul.f32 %v41, %v57
  %v62 = vmul.f32 %v42, %v57
  %v63 = vmul.f32 %v43, %v57
  %v64 = vmul.f32 %v44, %v57
  %v65 = vmul.f32 %v45, %v57
  %v66 = vmul.f32 %v46, %v57
  %v67 = vmul.f32 %v47, %v57
  %v68 = vmul.f32 %v48, %v57
  %v69 = vmul.f32 %v49, %v57
  %v70 = vmul.f32 %v50, %v57
  %v71 = vmul.f32 %v51, %v57
  %v72 = vmul.f32 %v52, %v57
  %v73 = vmul.f32 %v53, %v57
  %v74 = vmul.f32 %v54, %v57
  %v75 = vld [vmem:[%s2] sm:$0x1]
  %v77 = vperm.slane %v75, 0
  %v79 = vadd.f32 %v59, %v77
  %v80 = vadd.f32 %v60, %v77
  %v81 = vadd.f32 %v61, %v77
  %v82 = vadd.f32 %v62, %v77
  %v83 = vadd.f32 %v63, %v77
  %v84 = vadd.f32 %v64, %v77
  %v85 = vadd.f32 %v65, %v77
  %v86 = vadd.f32 %v66, %v77
  %v87 = vadd.f32 %v67, %v77
  %v88 = vadd.f32 %v68, %v77
  %v89 = vadd.f32 %v69, %v77
  %v90 = vadd.f32 %v70, %v77
  %v91 = vadd.f32 %v71, %v77
  %v92 = vadd.f32 %v72, %v77
  %v93 = vadd.f32 %v73, %v77
  %v94 = vadd.f32 %v74, %v77
  %v95 = vmax.f32 %v79, 0.0
  %v96 = vmax.f32 %v80, 0.0
  %v97 = vmax.f32 %v81, 0.0
  %v98 = vmax.f32 %v82, 0.0
  %v99 = vmax.f32 %v83, 0.0
  %v100 = vmax.f32 %v84, 0.0
  %v101 = vmax.f32 %v85, 0.0
  %v102 = vmax.f32 %v86, 0.0
  %v103 = vmax.f32 %v87, 0.0
  %v104 = vmax.f32 %v88, 0.0
  %v105 = vmax.f32 %v89, 0.0
  %v106 = vmax.f32 %v90, 0.0
  %v107 = vmax.f32 %v91, 0.0
  %v108 = vmax.f32 %v92, 0.0
  %v109 = vmax.f32 %v93, 0.0
  %v110 = vmax.f32 %v94, 0.0
  %v111 = vmin.f32 %v95, 1.0
  %v112 = vmin.f32 %v96, 1.0
  %v113 = vmin.f32 %v97, 1.0
  %v114 = vmin.f32 %v98, 1.0
  %v115 = vmin.f32 %v99, 1.0
  %v116 = vmin.f32 %v100, 1.0
  %v117 = vmin.f32 %v101, 1.0
  %v118 = vmin.f32 %v102, 1.0
  %v119 = vmin.f32 %v103, 1.0
  %v120 = vmin.f32 %v104, 1.0
  %v121 = vmin.f32 %v105, 1.0
  %v122 = vmin.f32 %v106, 1.0
  %v123 = vmin.f32 %v107, 1.0
  %v124 = vmin.f32 %v108, 1.0
  %v125 = vmin.f32 %v109, 1.0
  %v126 = vmin.f32 %v110, 1.0
  %v127 = vmul.f32 %v111, 255.0
  %v128 = vmul.f32 %v112, 255.0
  %v129 = vmul.f32 %v113, 255.0
  %v130 = vmul.f32 %v114, 255.0
  %v131 = vmul.f32 %v115, 255.0
  %v132 = vmul.f32 %v116, 255.0
  %v133 = vmul.f32 %v117, 255.0
  %v134 = vmul.f32 %v118, 255.0
  %v135 = vmul.f32 %v119, 255.0
  %v136 = vmul.f32 %v120, 255.0
  %v137 = vmul.f32 %v121, 255.0
  %v138 = vmul.f32 %v122, 255.0
  %v139 = vmul.f32 %v123, 255.0
  %v140 = vmul.f32 %v124, 255.0
  %v141 = vmul.f32 %v125, 255.0
  %v142 = vmul.f32 %v126, 255.0
  %v143 = vround.ne.pseudo %v127
  %v144 = vround.ne.pseudo %v128
  %v145 = vround.ne.pseudo %v129
  %v146 = vround.ne.pseudo %v130
  %v147 = vround.ne.pseudo %v131
  %v148 = vround.ne.pseudo %v132
  %v149 = vround.ne.pseudo %v133
  %v150 = vround.ne.pseudo %v134
  %v151 = vround.ne.pseudo %v135
  %v152 = vround.ne.pseudo %v136
  %v153 = vround.ne.pseudo %v137
  %v154 = vround.ne.pseudo %v138
  %v155 = vround.ne.pseudo %v139
  %v156 = vround.ne.pseudo %v140
  %v157 = vround.ne.pseudo %v141
  %v158 = vround.ne.pseudo %v142
  %v159 = vrcp.pop 255.0
  %v160 = vmul.f32 255.0, %v159
  %v161 = vsub.f32 1.0, %v160
  %v162 = vmul.f32 %v159, %v161
  %v163 = vadd.f32 %v159, %v162
  %vm164 = vweird.f32 %v159
  %v165 = vsel %vm164, %v159, %v163
  %v166 = vmul.f32 %v143, %v165
  %v167 = vmul.f32 %v144, %v165
  %v168 = vmul.f32 %v145, %v165
  %v169 = vmul.f32 %v146, %v165
  %v170 = vmul.f32 %v147, %v165
  %v171 = vmul.f32 %v148, %v165
  %v172 = vmul.f32 %v149, %v165
  %v173 = vmul.f32 %v150, %v165
  %v174 = vmul.f32 %v151, %v165
  %v175 = vmul.f32 %v152, %v165
  %v176 = vmul.f32 %v153, %v165
  %v177 = vmul.f32 %v154, %v165
  %v178 = vmul.f32 %v155, %v165
  %v179 = vmul.f32 %v156, %v165
  %v180 = vmul.f32 %v157, %v165
  %v181 = vmul.f32 %v158, %v165
  %v182 = vld [vmem:[%s3] sm:$0xf]
  %v183 = vld [vmem:[%s3 + $0x4] sm:$0xf]
  %v184 = vld [vmem:[%s3 + $0x8] sm:$0xf]
  %v185 = vld [vmem:[%s3 + $0xc] sm:$0xf]
  %v186 = vld [vmem:[%s3 + $0x10] sm:$0xf]
  %v187 = vld [vmem:[%s3 + $0x14] sm:$0xf]
  %v188 = vld [vmem:[%s3 + $0x18] sm:$0xf]
  %v189 = vld [vmem:[%s3 + $0x1c] sm:$0xf]
  %v190 = vld [vmem:[%s3 + $0x20] sm:$0xf]
  %v191 = vld [vmem:[%s3 + $0x24] sm:$0xf]
  %v192 = vld [vmem:[%s3 + $0x28] sm:$0xf]
  %v193 = vld [vmem:[%s3 + $0x2c] sm:$0xf]
  %v194 = vld [vmem:[%s3 + $0x30] sm:$0xf]
  %v195 = vld [vmem:[%s3 + $0x34] sm:$0xf]
  %v196 = vld [vmem:[%s3 + $0x38] sm:$0xf]
  %v197 = vld [vmem:[%s3 + $0x3c] sm:$0xf]
  %v198 = vunpack.c.l.bf16 %v182
  %v199 = vunpack.c.l.bf16 %v183
  %v200 = vunpack.c.l.bf16 %v184
  %v201 = vunpack.c.l.bf16 %v185
  %v202 = vunpack.c.l.bf16 %v186
  %v203 = vunpack.c.l.bf16 %v187
  %v204 = vunpack.c.l.bf16 %v188
  %v205 = vunpack.c.l.bf16 %v189
  %v206 = vunpack.c.l.bf16 %v190
  %v207 = vunpack.c.l.bf16 %v191
  %v208 = vunpack.c.l.bf16 %v192
  %v209 = vunpack.c.l.bf16 %v193
  %v210 = vunpack.c.l.bf16 %v194
  %v211 = vunpack.c.l.bf16 %v195
  %v212 = vunpack.c.l.bf16 %v196
  %v213 = vunpack.c.l.bf16 %v197
  %v214 = vld [vmem:[%s4] sm:$0x1]
  %v216 = vperm.slane %v214, 0
  %v218 = vmul.f32 %v198, %v216
  %v219 = vmul.f32 %v199, %v216
  %v220 = vmul.f32 %v200, %v216
  %v221 = vmul.f32 %v201, %v216
  %v222 = vmul.f32 %v202, %v216
  %v223 = vmul.f32 %v203, %v216
  %v224 = vmul.f32 %v204, %v216
  %v225 = vmul.f32 %v205, %v216
  %v226 = vmul.f32 %v206, %v216
  %v227 = vmul.f32 %v207, %v216
  %v228 = vmul.f32 %v208, %v216
  %v229 = vmul.f32 %v209, %v216
  %v230 = vmul.f32 %v210, %v216
  %v231 = vmul.f32 %v211, %v216
  %v232 = vmul.f32 %v212, %v216
  %v233 = vmul.f32 %v213, %v216
  %v234 = vld [vmem:[%s5] sm:$0x1]
  %v236 = vperm.slane %v234, 0
  %v238 = vadd.f32 %v218, %v236
  %v239 = vadd.f32 %v219, %v236
  %v240 = vadd.f32 %v220, %v236
  %v241 = vadd.f32 %v221, %v236
  %v242 = vadd.f32 %v222, %v236
  %v243 = vadd.f32 %v223, %v236
  %v244 = vadd.f32 %v224, %v236
  %v245 = vadd.f32 %v225, %v236
  %v246 = vadd.f32 %v226, %v236
  %v247 = vadd.f32 %v227, %v236
  %v248 = vadd.f32 %v228, %v236
  %v249 = vadd.f32 %v229, %v236
  %v250 = vadd.f32 %v230, %v236
  %v251 = vadd.f32 %v231, %v236
  %v252 = vadd.f32 %v232, %v236
  %v253 = vadd.f32 %v233, %v236
  %v254 = vmax.f32 %v238, 0.0
  %v255 = vmax.f32 %v239, 0.0
  %v256 = vmax.f32 %v240, 0.0
  %v257 = vmax.f32 %v241, 0.0
  %v258 = vmax.f32 %v242, 0.0
  %v259 = vmax.f32 %v243, 0.0
  %v260 = vmax.f32 %v244, 0.0
  %v261 = vmax.f32 %v245, 0.0
  %v262 = vmax.f32 %v246, 0.0
  %v263 = vmax.f32 %v247, 0.0
  %v264 = vmax.f32 %v248, 0.0
  %v265 = vmax.f32 %v249, 0.0
  %v266 = vmax.f32 %v250, 0.0
  %v267 = vmax.f32 %v251, 0.0
  %v268 = vmax.f32 %v252, 0.0
  %v269 = vmax.f32 %v253, 0.0
  %v270 = vmin.f32 %v254, 1.0
  %v271 = vmin.f32 %v255, 1.0
  %v272 = vmin.f32 %v256, 1.0
  %v273 = vmin.f32 %v257, 1.0
  %v274 = vmin.f32 %v258, 1.0
  %v275 = vmin.f32 %v259, 1.0
  %v276 = vmin.f32 %v260, 1.0
  %v277 = vmin.f32 %v261, 1.0
  %v278 = vmin.f32 %v262, 1.0
  %v279 = vmin.f32 %v263, 1.0
  %v280 = vmin.f32 %v264, 1.0
  %v281 = vmin.f32 %v265, 1.0
  %v282 = vmin.f32 %v266, 1.0
  %v283 = vmin.f32 %v267, 1.0
  %v284 = vmin.f32 %v268, 1.0
  %v285 = vmin.f32 %v269, 1.0
  %v286 = vmul.f32 %v270, 255.0
  %v287 = vmul.f32 %v271, 255.0
  %v288 = vmul.f32 %v272, 255.0
  %v289 = vmul.f32 %v273, 255.0
  %v290 = vmul.f32 %v274, 255.0
  %v291 = vmul.f32 %v275, 255.0
  %v292 = vmul.f32 %v276, 255.0
  %v293 = vmul.f32 %v277, 255.0
  %v294 = vmul.f32 %v278, 255.0
  %v295 = vmul.f32 %v279, 255.0
  %v296 = vmul.f32 %v280, 255.0
  %v297 = vmul.f32 %v281, 255.0
  %v298 = vmul.f32 %v282, 255.0
  %v299 = vmul.f32 %v283, 255.0
  %v300 = vmul.f32 %v284, 255.0
  %v301 = vmul.f32 %v285, 255.0
  %v302 = vround.ne.pseudo %v286
  %v303 = vround.ne.pseudo %v287
  %v304 = vround.ne.pseudo %v288
  %v305 = vround.ne.pseudo %v289
  %v306 = vround.ne.pseudo %v290
  %v307 = vround.ne.pseudo %v291
  %v308 = vround.ne.pseudo %v292
  %v309 = vround.ne.pseudo %v293
  %v310 = vround.ne.pseudo %v294
  %v311 = vround.ne.pseudo %v295
  %v312 = vround.ne.pseudo %v296
  %v313 = vround.ne.pseudo %v297
  %v314 = vround.ne.pseudo %v298
  %v315 = vround.ne.pseudo %v299
  %v316 = vround.ne.pseudo %v300
  %v317 = vround.ne.pseudo %v301
  %v318 = vmul.f32 %v302, %v165
  %v319 = vmul.f32 %v303, %v165
  %v320 = vmul.f32 %v304, %v165
  %v321 = vmul.f32 %v305, %v165
  %v322 = vmul.f32 %v306, %v165
  %v323 = vmul.f32 %v307, %v165
  %v324 = vmul.f32 %v308, %v165
  %v325 = vmul.f32 %v309, %v165
  %v326 = vmul.f32 %v310, %v165
  %v327 = vmul.f32 %v311, %v165
  %v328 = vmul.f32 %v312, %v165
  %v329 = vmul.f32 %v313, %v165
  %v330 = vmul.f32 %v314, %v165
  %v331 = vmul.f32 %v315, %v165
  %v332 = vmul.f32 %v316, %v165
  %v333 = vmul.f32 %v317, %v165
  %v334 = vadd.f32 %v166, %v318
  %v335 = vadd.f32 %v167, %v319
  %v336 = vadd.f32 %v168, %v320
  %v337 = vadd.f32 %v169, %v321
  %v338 = vadd.f32 %v170, %v322
  %v339 = vadd.f32 %v171, %v323
  %v340 = vadd.f32 %v172, %v324
  %v341 = vadd.f32 %v173, %v325
  %v342 = vadd.f32 %v174, %v326
  %v343 = vadd.f32 %v175, %v327
  %v344 = vadd.f32 %v176, %v328
  %v345 = vadd.f32 %v177, %v329
  %v346 = vadd.f32 %v178, %v330
  %v347 = vadd.f32 %v179, %v331
  %v348 = vadd.f32 %v180, %v332
  %v349 = vadd.f32 %v181, %v333
  %v350 = vmax.f32 %v334, 0.0
  %v351 = vmax.f32 %v335, 0.0
  %v352 = vmax.f32 %v336, 0.0
  %v353 = vmax.f32 %v337, 0.0
  %v354 = vmax.f32 %v338, 0.0
  %v355 = vmax.f32 %v339, 0.0
  %v356 = vmax.f32 %v340, 0.0
  %v357 = vmax.f32 %v341, 0.0
  %v358 = vmax.f32 %v342, 0.0
  %v359 = vmax.f32 %v343, 0.0
  %v360 = vmax.f32 %v344, 0.0
  %v361 = vmax.f32 %v345, 0.0
  %v362 = vmax.f32 %v346, 0.0
  %v363 = vmax.f32 %v347, 0.0
  %v364 = vmax.f32 %v348, 0.0
  %v365 = vmax.f32 %v349, 0.0
  %366 = vst [vmem:[%s6] sm:$0xff] %v350
  %367 = vst [vmem:[%s6 + $0x8] sm:$0xff] %v351
  %368 = vst [vmem:[%s6 + $0x10] sm:$0xff] %v352
  %369 = vst [vmem:[%s6 + $0x18] sm:$0xff] %v353
  %370 = vst [vmem:[%s6 + $0x20] sm:$0xff] %v354
  %371 = vst [vmem:[%s6 + $0x28] sm:$0xff] %v355
  %372 = vst [vmem:[%s6 + $0x30] sm:$0xff] %v356
  %373 = vst [vmem:[%s6 + $0x38] sm:$0xff] %v357
  %374 = vst [vmem:[%s6 + $0x40] sm:$0xff] %v358
  %375 = vst [vmem:[%s6 + $0x48] sm:$0xff] %v359
  %376 = vst [vmem:[%s6 + $0x50] sm:$0xff] %v360
  %377 = vst [vmem:[%s6 + $0x58] sm:$0xff] %v361
  %378 = vst [vmem:[%s6 + $0x60] sm:$0xff] %v362
  %379 = vst [vmem:[%s6 + $0x68] sm:$0xff] %v363
  %380 = vst [vmem:[%s6 + $0x70] sm:$0xff] %v364
  %381 = vst [vmem:[%s6 + $0x78] sm:$0xff] %v365
  // Predicated region
  $region26: #{preact_block_forward.9} parent=0 // pred_check
    _
  $region27: #{preact_block_forward.9} parent=0 // pred_check_branch
    %383 = sbr.rel (0) target = $region29
  $region28: #{preact_block_forward.9} parent=0 // pred_region
    _
  $region29: #{preact_block_forward.9} parent=0 // pred_fallthru
    _
  // Predicated region
  $region30: #{preact_block_forward.9} parent=0 // pred_check
    _
  $region31: #{preact_block_forward.9} parent=0 // pred_check_branch
    %385 = sbr.rel (0) target = $region33
  $region32: #{preact_block_forward.9} parent=0 // pred_region
    _
  $region33: #{preact_block_forward.9} parent=0 // pred_fallthru
    _

</llo_original>
